<compile_context>
chip_gen: v7x
topology: tpu7x:2x2x1
jax: 0.10.0
libtpu: 0.0.40
codegen_flags: <defaults>
</compile_context>

<pallas_src>
import jax
import jax.numpy as jnp
from jax.experimental import pallas as pl
from jax.experimental.pallas import tpu as pltpu

LANE = 128
_MAX_TB = 1024   # double-buffered f32 x tiles + weights + out ~ 27 MiB @ 1024 (v7x-safe)


def mlp2_kernel(x_ref, w1_ref, w2_ref, w3_ref, o_ref):
    # f32 -> bf16 cast per tile in VMEM (no extra HBM pass over x in the wrapper).
    x = x_ref[...].astype(jnp.bfloat16)
    # Layer 1: (tb, D_in)bf16 @ (D_in, H)bf16 -> f32 accumulator, ReLU in f32.
    h = jnp.dot(x, w1_ref[...], preferred_element_type=jnp.float32)
    h = jnp.maximum(h, 0.0).astype(jnp.bfloat16)
    # Layer 2
    h = jnp.dot(h, w2_ref[...], preferred_element_type=jnp.float32)
    h = jnp.maximum(h, 0.0).astype(jnp.bfloat16)
    # Output layer (no activation); lane-dense (tb, 128) f32 store.
    o_ref[...] = jnp.dot(h, w3_ref[...], preferred_element_type=jnp.float32)


def prepare_params(w1, w2, w3):
    """One-time (init-time) weight prep: cast to bf16, lane-pad w3 to 128 cols."""
    n_classes = w3.shape[1]
    n_pad = pl.cdiv(max(n_classes, LANE), LANE) * LANE
    w1b = w1.astype(jnp.bfloat16)
    w2b = w2.astype(jnp.bfloat16)
    w3b = jnp.pad(w3, ((0, 0), (0, n_pad - n_classes))).astype(jnp.bfloat16)
    return w1b, w2b, w3b


def _choose_tb(batch, tb_requested):
    """Pick the batch tile: big tiles for throughput, >=2 grid steps for v7x
    megacore when possible, and tb == B (no padded-row compute) for tiny B."""
    tb = max(8, (min(int(tb_requested), _MAX_TB) // 8) * 8)
    if batch > tb:
        return tb                                   # grid >= 2 automatically
    if batch >= 256:
        # Split into two tiles so both v7x TensorCores get a grid step.
        return ((pl.cdiv(batch, 2) + 7) // 8) * 8
    return batch                                    # single block; block dim == array dim


def mlp2_forward(x_nchw, w1b, w2b, w3b, n_classes, *, tb=512):
    """x_nchw: (B, C, 32, 32) float32. Weights from prepare_params() (bf16,
    stored (in_features, out_features), w3 lane-padded).

    Returns (B, n_classes) float32 — same semantics as the PyTorch module
    (bias=False) up to bf16 operand precision (accumulation is f32)."""
    B = x_nchw.shape[0]
    d_in, n_units = w1b.shape
    n_pad = w3b.shape[1]

    # nn.Flatten on NCHW -> (B, C*H*W).  No cast, no batch pad here.
    x_flat = x_nchw.reshape(B, d_in)

    tb_eff = _choose_tb(B, tb)
    grid = (pl.cdiv(B, tb_eff),)

    flops = 2 * B * (d_in * n_units + n_units * n_units + n_units * n_pad)
    bytes_accessed = (4 * B * d_in                              # f32 x streamed in
                      + 2 * (w1b.size + w2b.size + w3b.size)    # bf16 weights
                      + 4 * B * n_pad)                          # f32 logits out
    cost = pl.CostEstimate(flops=flops, transcendentals=0,
                           bytes_accessed=bytes_accessed)

    out_padded = pl.pallas_call(
        mlp2_kernel,
        out_shape=jax.ShapeDtypeStruct((B, n_pad), jnp.float32),
        grid_spec=pltpu.PrefetchScalarGridSpec(
            num_scalar_prefetch=0,
            grid=grid,
            in_specs=[
                # x tile marches over the batch; weights stay VMEM-resident.
                pl.BlockSpec((tb_eff, d_in), lambda i: (i, 0)),
                pl.BlockSpec((d_in, n_units), lambda i: (0, 0)),
                pl.BlockSpec((n_units, n_units), lambda i: (0, 0)),
                pl.BlockSpec((n_units, n_pad), lambda i: (0, 0)),
            ],
            out_specs=pl.BlockSpec((tb_eff, n_pad), lambda i: (i, 0)),
        ),
        compiler_params=pltpu.CompilerParams(
            dimension_semantics=("parallel",),
            vmem_limit_bytes=32 * 1024 * 1024,
        ),
        cost_estimate=cost,
    )(x_flat, w1b, w2b, w3b)

    return out_padded[:, :n_classes]


def init_params(key, n_channels, n_units, n_classes):
    """PyTorch-style init U(-1/sqrt(fan_in), 1/sqrt(fan_in)); weights (in, out)."""
    d_in = 32 * 32 * n_channels
    dims = [(d_in, n_units), (n_units, n_units), (n_units, n_classes)]
    keys = jax.random.split(key, len(dims))
    ws = []
    for k, (fi, fo) in zip(keys, dims):
        bound = 1.0 / jnp.sqrt(jnp.float32(fi))
        ws.append(jax.random.uniform(k, (fi, fo), jnp.float32,
                                     minval=-bound, maxval=bound))
    return ws


if __name__ == "__main__":
    key = jax.random.PRNGKey(0)
    k_x, k_w = jax.random.split(key)

    # Small shapes consistent with the module: spatial must be 32x32.
    B, C = 2, 3                 # batch, channels
    n_units, n_classes = 128, 10

    x = jax.random.normal(k_x, (B, C, 32, 32), dtype=jnp.float32)
    w1, w2, w3 = init_params(k_w, C, n_units, n_classes)
    w1b, w2b, w3b = prepare_params(w1, w2, w3)   # one-time weight prep

    out = mlp2_forward(x, w1b, w2b, w3b, n_classes)
    out = jax.block_until_ready(out)
    assert out.shape == (B, n_classes)

    # Reference with matching bf16-operand / f32-accumulate numerics.
    hb = x.reshape(B, -1).astype(jnp.bfloat16)
    hb = jnp.maximum(jnp.dot(hb, w1.astype(jnp.bfloat16),
                             preferred_element_type=jnp.float32), 0.0)
    hb = jnp.maximum(jnp.dot(hb.astype(jnp.bfloat16), w2.astype(jnp.bfloat16),
                             preferred_element_type=jnp.float32), 0.0)
    ref = jnp.dot(hb.astype(jnp.bfloat16), w3.astype(jnp.bfloat16),
                  preferred_element_type=jnp.float32)
    assert jnp.allclose(out, ref, atol=1e-2, rtol=1e-2), (
        f"max abs err {jnp.max(jnp.abs(out - ref))}")

    # Loose sanity check against the pure-f32 reference as well.
    hf = x.reshape(B, -1)
    hf = jnp.maximum(hf @ w1, 0.0)
    hf = jnp.maximum(hf @ w2, 0.0)
    ref_f32 = hf @ w3
    assert jnp.allclose(out, ref_f32, atol=5e-2, rtol=5e-2)

    print("KERNEL_OK")
</pallas_src>

<mosaic_0001>
module attributes {stable_mosaic.version = 11 : i64} {
  func.func @mlp2_kernel(%arg0: i32, %arg1: memref<2x3072xf32, #tpu.memory_space<vmem>>, %arg2: memref<3072x128xbf16, #tpu.memory_space<vmem>>, %arg3: memref<128x128xbf16, #tpu.memory_space<vmem>>, %arg4: memref<128x128xbf16, #tpu.memory_space<vmem>>, %arg5: memref<2x128xf32, #tpu.memory_space<vmem>>) attributes {dimension_semantics = [#tpu.dimension_semantics<parallel>], iteration_bounds = array<i64: 1>, scalar_prefetch = 0 : i64, scratch_operands = 0 : i64, tpu.core_type = #tpu.core_type<tc>, window_params = [{transform_indices = @transform_0, window_bounds = array<i64: 2, 3072>}, {pipeline_mode = #tpu.pipeline_mode<synchronous>, transform_indices = @transform_1, window_bounds = array<i64: 3072, 128>}, {pipeline_mode = #tpu.pipeline_mode<synchronous>, transform_indices = @transform_2, window_bounds = array<i64: 128, 128>}, {pipeline_mode = #tpu.pipeline_mode<synchronous>, transform_indices = @transform_3, window_bounds = array<i64: 128, 128>}, {transform_indices = @transform_4, window_bounds = array<i64: 2, 128>}]} {
    %c0 = arith.constant 0 : index
    %c0_0 = arith.constant 0 : index
    %0 = vector.load %arg1[%c0, %c0_0] : memref<2x3072xf32, #tpu.memory_space<vmem>>, vector<2x3072xf32>
    %1 = arith.truncf %0 : vector<2x3072xf32> to vector<2x3072xbf16>
    %c0_1 = arith.constant 0 : index
    %c0_2 = arith.constant 0 : index
    %2 = vector.load %arg2[%c0_1, %c0_2] : memref<3072x128xbf16, #tpu.memory_space<vmem>>, vector<3072x128xbf16>
    %cst = arith.constant dense<0.000000e+00> : vector<2x128xf32>
    %3 = tpu.matmul %1, %2, %cst {dimension_numbers = #tpu.dot_dimension_numbers<[1], [0], [0], [1], [0, 0, 1, 1], [], []>} : vector<2x3072xbf16>, vector<3072x128xbf16>, vector<2x128xf32> -> vector<2x128xf32>
    %cst_3 = arith.constant 0.000000e+00 : f32
    %4 = vector.broadcast %cst_3 : f32 to vector<2x128xf32>
    %5 = arith.maximumf %3, %4 : vector<2x128xf32>
    %6 = arith.truncf %5 : vector<2x128xf32> to vector<2x128xbf16>
    %c0_4 = arith.constant 0 : index
    %c0_5 = arith.constant 0 : index
    %7 = vector.load %arg3[%c0_4, %c0_5] : memref<128x128xbf16, #tpu.memory_space<vmem>>, vector<128x128xbf16>
    %cst_6 = arith.constant dense<0.000000e+00> : vector<2x128xf32>
    %8 = tpu.matmul %6, %7, %cst_6 {dimension_numbers = #tpu.dot_dimension_numbers<[1], [0], [0], [1], [0, 0, 1, 1], [], []>} : vector<2x128xbf16>, vector<128x128xbf16>, vector<2x128xf32> -> vector<2x128xf32>
    %cst_7 = arith.constant 0.000000e+00 : f32
    %9 = vector.broadcast %cst_7 : f32 to vector<2x128xf32>
    %10 = arith.maximumf %8, %9 : vector<2x128xf32>
    %11 = arith.truncf %10 : vector<2x128xf32> to vector<2x128xbf16>
    %c0_8 = arith.constant 0 : index
    %c0_9 = arith.constant 0 : index
    %12 = vector.load %arg4[%c0_8, %c0_9] : memref<128x128xbf16, #tpu.memory_space<vmem>>, vector<128x128xbf16>
    %cst_10 = arith.constant dense<0.000000e+00> : vector<2x128xf32>
    %13 = tpu.matmul %11, %12, %cst_10 {dimension_numbers = #tpu.dot_dimension_numbers<[1], [0], [0], [1], [0, 0, 1, 1], [], []>} : vector<2x128xbf16>, vector<128x128xbf16>, vector<2x128xf32> -> vector<2x128xf32>
    %c0_11 = arith.constant 0 : index
    %c0_12 = arith.constant 0 : index
    %14 = vector.load %arg5[%c0_11, %c0_12] : memref<2x128xf32, #tpu.memory_space<vmem>>, vector<2x128xf32>
    tpu.vector_store %arg5[%c0_11, %c0_12], %13 {strides = array<i32>} : memref<2x128xf32, #tpu.memory_space<vmem>>, vector<2x128xf32>,
    return
  }
  func.func @transform_0(%arg0: i32) -> (i32, i32) {
    %c0_i32 = arith.constant 0 : i32
    %c0_i32_0 = arith.constant 0 : i32
    return %arg0, %c0_i32 : i32, i32
  }
  func.func @transform_1(%arg0: i32) -> (i32, i32) {
    %c0_i32 = arith.constant 0 : i32
    %c0_i32_0 = arith.constant 0 : i32
    %c0_i32_1 = arith.constant 0 : i32
    return %c0_i32, %c0_i32_0 : i32, i32
  }
  func.func @transform_2(%arg0: i32) -> (i32, i32) {
    %c0_i32 = arith.constant 0 : i32
    %c0_i32_0 = arith.constant 0 : i32
    %c0_i32_1 = arith.constant 0 : i32
    return %c0_i32, %c0_i32_0 : i32, i32
  }
  func.func @transform_3(%arg0: i32) -> (i32, i32) {
    %c0_i32 = arith.constant 0 : i32
    %c0_i32_0 = arith.constant 0 : i32
    %c0_i32_1 = arith.constant 0 : i32
    return %c0_i32, %c0_i32_0 : i32, i32
  }
  func.func @transform_4(%arg0: i32) -> (i32, i32) {
    %c0_i32 = arith.constant 0 : i32
    %c0_i32_0 = arith.constant 0 : i32
    return %arg0, %c0_i32 : i32, i32
  }
}

</mosaic_0001>

<llo_original>
// kernel: tpu_custom_call.1
$region0: #{tpu_custom_call.1}
  #allocation0 [shape = 'u32[]', space=smem, size = 0x4, offset = 0x4, fixed_abs, tag = 'smem constant byte address 0x4 - core index']
  #allocation1 [shape = 'u32[144,128]{1,0:T(1,128)}', space=vmem, size = 0x12000, scoped, tag = 'internal scratch']
  %s0 = inlined_call_operand.hbm [shape: f32[2,3072], index: 0, kind: input, shape index: {}]
  %s1 = inlined_call_operand.hbm [shape: bf16[3072,128], index: 1, kind: input, shape index: {}]
  %s2 = inlined_call_operand.hbm [shape: bf16[128,128], index: 2, kind: input, shape index: {}]
  %s3 = inlined_call_operand.hbm [shape: bf16[128,128], index: 3, kind: input, shape index: {}]
  %s4 = inlined_call_operand.hbm [shape: f32[2,128], index: 4, kind: output, shape index: {}]
  %s5 = sld [smem:[#allocation0]]
  $region42: #{tpu_custom_call.1} parent=0
    _
  %s7 = ssub.s32 1, %s5
  %s8 = scalar_select 0, %s7, %s5
  $region1: #{tpu_custom_call.1} parent=0
    #allocation2 [shape = 'u8[24576]{0}', space=vmem, size = 0x6000, scoped, tag = 'input window, operand 0, single buffered']
    #allocation3 [shape = 's32[1]{0}', space=sflag, size = 0x4, scoped, tag = 'scoped memory for tpu_custom_call.1']
    #allocation4 [shape = 's32[1]{0}', space=sflag, size = 0x4, scoped, tag = 'scoped memory for tpu_custom_call.1']
    #allocation5 [shape = 'u8[786432]{0}', space=vmem, size = 0xc0000, scoped, tag = 'input window, operand 1, single buffered']
    #allocation6 [shape = 's32[1]{0}', space=sflag, size = 0x4, scoped, tag = 'scoped memory for tpu_custom_call.1']
    #allocation7 [shape = 'u8[32768]{0}', space=vmem, size = 0x8000, scoped, tag = 'input window, operand 2, single buffered']
    #allocation8 [shape = 'u8[32768]{0}', space=vmem, size = 0x8000, scoped, tag = 'input window, operand 3, single buffered']
    #allocation9 [shape = 's32[1]{0}', space=sflag, size = 0x4, scoped, tag = 'scoped memory for tpu_custom_call.1']
    #allocation10 [shape = 'u8[1024]{0}', space=vmem, size = 0x400, scoped, tag = 'output window, operand 0, single buffered']
    %9 = vsyncpa [#allocation3], 0
    %10 = vsyncpa [#allocation6], 0
    %11 = vsyncpa [#allocation9], 0
    %12 = vsyncpa [#allocation4], 0
    // Predicated region
    $region2: #{tpu_custom_call.1} parent=1 // pred_check
      _
    $region3: #{tpu_custom_call.1} parent=1 // pred_check_branch
      %14 = sbr.rel (0) target = $region5
    $region4: #{tpu_custom_call.1} parent=1 // pred_region
      %s16 = ssub.s32 768, 768
      %17 = vsyncadd [#allocation3], %s16
      %s19 = sshll.u32 [#allocation2], 4
      %s20 = int_to_ptr.vmem [resolvable:$true] %s19
      %22 = dma.hbm_to_vmem [thread:$0]  %s0, 768, %s20, [#allocation3]
    $region5: #{tpu_custom_call.1} parent=1 // pred_fallthru
      _
    // Predicated region
    $region6: #{tpu_custom_call.1} parent=1 // pred_check
      _
    $region7: #{tpu_custom_call.1} parent=1 // pred_check_branch
      %24 = sbr.rel (0) target = $region9
    $region8: #{tpu_custom_call.1} parent=1 // pred_region
      %s26 = ssub.s32 24576, 24576
      %27 = vsyncadd [#allocation6], %s26
      %s28 = sshll.u32 [#allocation5], 4
      %s29 = int_to_ptr.vmem [resolvable:$true] %s28
      %34 = dma.hbm_to_vmem [thread:$0]  %s1, 24576, %s29, [#allocation6], 64, 64, 4
    $region9: #{tpu_custom_call.1} parent=1 // pred_fallthru
      _
    // Predicated region
    $region10: #{tpu_custom_call.1} parent=1 // pred_check
      _
    $region11: #{tpu_custom_call.1} parent=1 // pred_check_branch
      %36 = sbr.rel (0) target = $region13
    $region12: #{tpu_custom_call.1} parent=1 // pred_region
      %s38 = ssub.s32 1024, 1024
      %39 = vsyncadd [#allocation6], %s38
      %s40 = sshll.u32 [#allocation7], 4
      %s41 = int_to_ptr.vmem [resolvable:$true] %s40
      %46 = dma.hbm_to_vmem [thread:$0]  %s2, 1024, %s41, [#allocation6], 64, 64, 4
    $region13: #{tpu_custom_call.1} parent=1 // pred_fallthru
      _
    // Predicated region
    $region14: #{tpu_custom_call.1} parent=1 // pred_check
      _
    $region15: #{tpu_custom_call.1} parent=1 // pred_check_branch
      %48 = sbr.rel (0) target = $region17
    $region16: #{tpu_custom_call.1} parent=1 // pred_region
      %s50 = ssub.s32 1024, 1024
      %51 = vsyncadd [#allocation9], %s50
      %s52 = sshll.u32 [#allocation8], 4
      %s53 = int_to_ptr.vmem [resolvable:$true] %s52
      %58 = dma.hbm_to_vmem [thread:$0]  %s3, 1024, %s53, [#allocation9], 64, 64, 4
    $region17: #{tpu_custom_call.1} parent=1 // pred_fallthru
      _
    // Predicated region
    $region18: #{tpu_custom_call.1} parent=1 // pred_check
      _
    $region19: #{tpu_custom_call.1} parent=1 // pred_check_branch
      %60 = sbr.rel (0) target = $region21
    $region20: #{tpu_custom_call.1} parent=1 // pred_region
      %61 = dma.done [#allocation3], 768
    $region21: #{tpu_custom_call.1} parent=1 // pred_fallthru
      _
    // Predicated region
    $region22: #{tpu_custom_call.1} parent=1 // pred_check
      _
    $region23: #{tpu_custom_call.1} parent=1 // pred_check_branch
      %63 = sbr.rel (0) target = $region25
    $region24: #{tpu_custom_call.1} parent=1 // pred_region
      %64 = dma.done [#allocation6], 24576
    $region25: #{tpu_custom_call.1} parent=1 // pred_fallthru
      _
    // Predicated region
    $region26: #{tpu_custom_call.1} parent=1 // pred_check
      _
    $region27: #{tpu_custom_call.1} parent=1 // pred_check_branch
      %66 = sbr.rel (0) target = $region29
    $region28: #{tpu_custom_call.1} parent=1 // pred_region
      %67 = dma.done [#allocation6], 1024
    $region29: #{tpu_custom_call.1} parent=1 // pred_fallthru
      _
    // Predicated region
    $region30: #{tpu_custom_call.1} parent=1 // pred_check
      _
    $region31: #{tpu_custom_call.1} parent=1 // pred_check_branch
      %69 = sbr.rel (0) target = $region33
    $region32: #{tpu_custom_call.1} parent=1 // pred_region
      %70 = dma.done [#allocation9], 1024
    $region33: #{tpu_custom_call.1} parent=1 // pred_fallthru
      _
    %v72 = vld [vmem:[#allocation2] sm:$0xff]
    %v73 = vld [vmem:[#allocation2 + $0x8] sm:$0xff]
    %v74 = vld [vmem:[#allocation2 + $0x10] sm:$0xff]
    %v75 = vld [vmem:[#allocation2 + $0x18] sm:$0xff]
    %v76 = vld [vmem:[#allocation2 + $0x20] sm:$0xff]
    %v77 = vld [vmem:[#allocation2 + $0x28] sm:$0xff]
    %v84 = vcombine.high %v72, %v72
    %v86 = vunpack.c.l.s4 1983009808
    %v87 = vunpack.c.0.s8 %v86
    %v88 = vlaneseq
    %v89 = vshrl.u32 %v88, 7
    %v90 = vsub.s32 %v87, %v89
    %v91 = vrot.slane %v72, %v90
    %v93 = vunpack.c.l.s4 1983009808
    %v94 = vunpack.c.0.s8 %v93
    %v95 = vlaneseq
    %v96 = vshrl.u32 %v95, 7
    %v97 = vsub.s32 %v94, %v96
    %v98 = vrot.slane %v84, %v97
    %v99 = vcombine.high %v91, %v91
    %v100 = vcombine.high %v98, %v98
    %v101 = vcombine.high %v73, %v73
    %v103 = vunpack.c.l.s4 1983009808
    %v104 = vunpack.c.0.s8 %v103
    %v105 = vlaneseq
    %v106 = vshrl.u32 %v105, 7
    %v107 = vsub.s32 %v104, %v106
    %v108 = vrot.slane %v73, %v107
    %v110 = vunpack.c.l.s4 1983009808
    %v111 = vunpack.c.0.s8 %v110
    %v112 = vlaneseq
    %v113 = vshrl.u32 %v112, 7
    %v114 = vsub.s32 %v111, %v113
    %v115 = vrot.slane %v101, %v114
    %v116 = vcombine.high %v108, %v108
    %v117 = vcombine.high %v115, %v115
    %v118 = vcombine.high %v74, %v74
    %v120 = vunpack.c.l.s4 1983009808
    %v121 = vunpack.c.0.s8 %v120
    %v122 = vlaneseq
    %v123 = vshrl.u32 %v122, 7
    %v124 = vsub.s32 %v121, %v123
    %v125 = vrot.slane %v74, %v124
    %v127 = vunpack.c.l.s4 1983009808
    %v128 = vunpack.c.0.s8 %v127
    %v129 = vlaneseq
    %v130 = vshrl.u32 %v129, 7
    %v131 = vsub.s32 %v128, %v130
    %v132 = vrot.slane %v118, %v131
    %v133 = vcombine.high %v125, %v125
    %v134 = vcombine.high %v132, %v132
    %v135 = vcombine.high %v75, %v75
    %v137 = vunpack.c.l.s4 1983009808
    %v138 = vunpack.c.0.s8 %v137
    %v139 = vlaneseq
    %v140 = vshrl.u32 %v139, 7
    %v141 = vsub.s32 %v138, %v140
    %v142 = vrot.slane %v75, %v141
    %v144 = vunpack.c.l.s4 1983009808
    %v145 = vunpack.c.0.s8 %v144
    %v146 = vlaneseq
    %v147 = vshrl.u32 %v146, 7
    %v148 = vsub.s32 %v145, %v147
    %v149 = vrot.slane %v135, %v148
    %v150 = vcombine.high %v142, %v142
    %v151 = vcombine.high %v149, %v149
    %v152 = vcombine.high %v76, %v76
    %v154 = vunpack.c.l.s4 1983009808
    %v155 = vunpack.c.0.s8 %v154
    %v156 = vlaneseq
    %v157 = vshrl.u32 %v156, 7
    %v158 = vsub.s32 %v155, %v157
    %v159 = vrot.slane %v76, %v158
    %v161 = vunpack.c.l.s4 1983009808
    %v162 = vunpack.c.0.s8 %v161
    %v163 = vlaneseq
    %v164 = vshrl.u32 %v163, 7
    %v165 = vsub.s32 %v162, %v164
    %v166 = vrot.slane %v152, %v165
    %v167 = vcombine.high %v159, %v159
    %v168 = vcombine.high %v166, %v166
    %v169 = vcombine.high %v77, %v77
    %v171 = vunpack.c.l.s4 1983009808
    %v172 = vunpack.c.0.s8 %v171
    %v173 = vlaneseq
    %v174 = vshrl.u32 %v173, 7
    %v175 = vsub.s32 %v172, %v174
    %v176 = vrot.slane %v77, %v175
    %v178 = vunpack.c.l.s4 1983009808
    %v179 = vunpack.c.0.s8 %v178
    %v180 = vlaneseq
    %v181 = vshrl.u32 %v180, 7
    %v182 = vsub.s32 %v179, %v181
    %v183 = vrot.slane %v169, %v182
    %v184 = vcombine.high %v176, %v176
    %v185 = vcombine.high %v183, %v183
    %v210 = vpack.c.bf16 %v91, %v91
    %v211 = vpack.c.bf16 %v99, %v99
    %v212 = vpack.c.bf16 %v98, %v98
    %v213 = vpack.c.bf16 %v100, %v100
    %v214 = vpack.c.bf16 %v108, %v108
    %v215 = vpack.c.bf16 %v116, %v116
    %v216 = vpack.c.bf16 %v115, %v115
    %v217 = vpack.c.bf16 %v117, %v117
    %v218 = vpack.c.bf16 %v125, %v125
    %v219 = vpack.c.bf16 %v133, %v133
    %v220 = vpack.c.bf16 %v132, %v132
    %v221 = vpack.c.bf16 %v134, %v134
    %v222 = vpack.c.bf16 %v142, %v142
    %v223 = vpack.c.bf16 %v150, %v150
    %v224 = vpack.c.bf16 %v149, %v149
    %v225 = vpack.c.bf16 %v151, %v151
    %v226 = vpack.c.bf16 %v159, %v159
    %v227 = vpack.c.bf16 %v167, %v167
    %v228 = vpack.c.bf16 %v166, %v166
    %v229 = vpack.c.bf16 %v168, %v168
    %v230 = vpack.c.bf16 %v176, %v176
    %v231 = vpack.c.bf16 %v184, %v184
    %v232 = vpack.c.bf16 %v183, %v183
    %v233 = vpack.c.bf16 %v185, %v185
    %v234 = vld [vmem:[#allocation5] sm:$0xf]
    %v235 = vld [vmem:[#allocation5 + $0x4] sm:$0xf]
    %v236 = vld [vmem:[#allocation5 + $0x8] sm:$0xf]
    %v237 = vld [vmem:[#allocation5 + $0xc] sm:$0xf]
    %v238 = vld [vmem:[#allocation5 + $0x10] sm:$0xf]
    %v239 = vld [vmem:[#allocation5 + $0x14] sm:$0xf]
    %v240 = vld [vmem:[#allocation5 + $0x18] sm:$0xf]
    %v241 = vld [vmem:[#allocation5 + $0x1c] sm:$0xf]
    %v242 = vld [vmem:[#allocation5 + $0x20] sm:$0xf]
    %v243 = vld [vmem:[#allocation5 + $0x24] sm:$0xf]
    %v244 = vld [vmem:[#allocation5 + $0x28] sm:$0xf]
    %v245 = vld [vmem:[#allocation5 + $0x2c] sm:$0xf]
    %v246 = vld [vmem:[#allocation5 + $0x30] sm:$0xf]
    %v247 = vld [vmem:[#allocation5 + $0x34] sm:$0xf]
    %v248 = vld [vmem:[#allocation5 + $0x38] sm:$0xf]
    %v249 = vld [vmem:[#allocation5 + $0x3c] sm:$0xf]
    %v250 = vld [vmem:[#allocation5 + $0x40] sm:$0xf]
    %v251 = vld [vmem:[#allocation5 + $0x44] sm:$0xf]
    %v252 = vld [vmem:[#allocation5 + $0x48] sm:$0xf]
    %v253 = vld [vmem:[#allocation5 + $0x4c] sm:$0xf]
    %v254 = vld [vmem:[#allocation5 + $0x50] sm:$0xf]
    %v255 = vld [vmem:[#allocation5 + $0x54] sm:$0xf]
    %v256 = vld [vmem:[#allocation5 + $0x58] sm:$0xf]
    %v257 = vld [vmem:[#allocation5 + $0x5c] sm:$0xf]
    %v258 = vld [vmem:[#allocation5 + $0x60] sm:$0xf]
    %v259 = vld [vmem:[#allocation5 + $0x64] sm:$0xf]
    %v260 = vld [vmem:[#allocation5 + $0x68] sm:$0xf]
    %v261 = vld [vmem:[#allocation5 + $0x6c] sm:$0xf]
    %v262 = vld [vmem:[#allocation5 + $0x70] sm:$0xf]
    %v263 = vld [vmem:[#allocation5 + $0x74] sm:$0xf]
    %v264 = vld [vmem:[#allocation5 + $0x78] sm:$0xf]
    %v265 = vld [vmem:[#allocation5 + $0x7c] sm:$0xf]
    %v266 = vld [vmem:[#allocation5 + $0x80] sm:$0xf]
    %v267 = vld [vmem:[#allocation5 + $0x84] sm:$0xf]
    %v268 = vld [vmem:[#allocation5 + $0x88] sm:$0xf]
    %v269 = vld [vmem:[#allocation5 + $0x8c] sm:$0xf]
    %v270 = vld [vmem:[#allocation5 + $0x90] sm:$0xf]
    %v271 = vld [vmem:[#allocation5 + $0x94] sm:$0xf]
    %v272 = vld [vmem:[#allocation5 + $0x98] sm:$0xf]
    %v273 = vld [vmem:[#allocation5 + $0x9c] sm:$0xf]
    %v274 = vld [vmem:[#allocation5 + $0xa0] sm:$0xf]
    %v275 = vld [vmem:[#allocation5 + $0xa4] sm:$0xf]
    %v276 = vld [vmem:[#allocation5 + $0xa8] sm:$0xf]
    %v277 = vld [vmem:[#allocation5 + $0xac] sm:$0xf]
    %v278 = vld [vmem:[#allocation5 + $0xb0] sm:$0xf]
    %v279 = vld [vmem:[#allocation5 + $0xb4] sm:$0xf]
    %v280 = vld [vmem:[#allocation5 + $0xb8] sm:$0xf]
    %v281 = vld [vmem:[#allocation5 + $0xbc] sm:$0xf]
    %v282 = vld [vmem:[#allocation5 + $0xc0] sm:$0xf]
    %v283 = vld [vmem:[#allocation5 + $0xc4] sm:$0xf]
    %v284 = vld [vmem:[#allocation5 + $0xc8] sm:$0xf]
    %v285 = vld [vmem:[#allocation5 + $0xcc] sm:$0xf]
    %v286 = vld [vmem:[#allocation5 + $0xd0] sm:$0xf]
    %v287 = vld [vmem:[#allocation5 + $0xd4] sm:$0xf]
    %v288 = vld [vmem:[#allocation5 + $0xd8] sm:$0xf]
    %v289 = vld [vmem:[#allocation5 + $0xdc] sm:$0xf]
    %v290 = vld [vmem:[#allocation5 + $0xe0] sm:$0xf]
    %v291 = vld [vmem:[#allocation5 + $0xe4] sm:$0xf]
    %v292 = vld [vmem:[#allocation5 + $0xe8] sm:$0xf]
    %v293 = vld [vmem:[#allocation5 + $0xec] sm:$0xf]
    %v294 = vld [vmem:[#allocation5 + $0xf0] sm:$0xf]
    %v295 = vld [vmem:[#allocation5 + $0xf4] sm:$0xf]
    %v296 = vld [vmem:[#allocation5 + $0xf8] sm:$0xf]
    %v297 = vld [vmem:[#allocation5 + $0xfc] sm:$0xf]
    %v298 = vld [vmem:[#allocation5 + $0x100] sm:$0xf]
    %v299 = vld [vmem:[#allocation5 + $0x104] sm:$0xf]
    %v300 = vld [vmem:[#allocation5 + $0x108] sm:$0xf]
    %v301 = vld [vmem:[#allocation5 + $0x10c] sm:$0xf]
    %v302 = vld [vmem:[#allocation5 + $0x110] sm:$0xf]
    %v303 = vld [vmem:[#allocation5 + $0x114] sm:$0xf]
    %v304 = vld [vmem:[#allocation5 + $0x118] sm:$0xf]
    %v305 = vld [vmem:[#allocation5 + $0x11c] sm:$0xf]
    %v306 = vld [vmem:[#allocation5 + $0x120] sm:$0xf]
    %v307 = vld [vmem:[#allocation5 + $0x124] sm:$0xf]
    %v308 = vld [vmem:[#allocation5 + $0x128] sm:$0xf]
    %v309 = vld [vmem:[#allocation5 + $0x12c] sm:$0xf]
    %v310 = vld [vmem:[#allocation5 + $0x130] sm:$0xf]
    %v311 = vld [vmem:[#allocation5 + $0x134] sm:$0xf]
    %v312 = vld [vmem:[#allocation5 + $0x138] sm:$0xf]
    %v313 = vld [vmem:[#allocation5 + $0x13c] sm:$0xf]
    %v314 = vld [vmem:[#allocation5 + $0x140] sm:$0xf]
    %v315 = vld [vmem:[#allocation5 + $0x144] sm:$0xf]
    %v316 = vld [vmem:[#allocation5 + $0x148] sm:$0xf]
    %v317 = vld [vmem:[#allocation5 + $0x14c] sm:$0xf]
    %v318 = vld [vmem:[#allocation5 + $0x150] sm:$0xf]
    %v319 = vld [vmem:[#allocation5 + $0x154] sm:$0xf]
    %v320 = vld [vmem:[#allocation5 + $0x158] sm:$0xf]
    %v321 = vld [vmem:[#allocation5 + $0x15c] sm:$0xf]
    %v322 = vld [vmem:[#allocation5 + $0x160] sm:$0xf]
    %v323 = vld [vmem:[#allocation5 + $0x164] sm:$0xf]
    %v324 = vld [vmem:[#allocation5 + $0x168] sm:$0xf]
    %v325 = vld [vmem:[#allocation5 + $0x16c] sm:$0xf]
    %v326 = vld [vmem:[#allocation5 + $0x170] sm:$0xf]
    %v327 = vld [vmem:[#allocation5 + $0x174] sm:$0xf]
    %v328 = vld [vmem:[#allocation5 + $0x178] sm:$0xf]
    %v329 = vld [vmem:[#allocation5 + $0x17c] sm:$0xf]
    %v330 = vld [vmem:[#allocation5 + $0x180] sm:$0xf]
    %v331 = vld [vmem:[#allocation5 + $0x184] sm:$0xf]
    %v332 = vld [vmem:[#allocation5 + $0x188] sm:$0xf]
    %v333 = vld [vmem:[#allocation5 + $0x18c] sm:$0xf]
    %v334 = vld [vmem:[#allocation5 + $0x190] sm:$0xf]
    %v335 = vld [vmem:[#allocation5 + $0x194] sm:$0xf]
    %v336 = vld [vmem:[#allocation5 + $0x198] sm:$0xf]
    %v337 = vld [vmem:[#allocation5 + $0x19c] sm:$0xf]
    %v338 = vld [vmem:[#allocation5 + $0x1a0] sm:$0xf]
    %v339 = vld [vmem:[#allocation5 + $0x1a4] sm:$0xf]
    %v340 = vld [vmem:[#allocation5 + $0x1a8] sm:$0xf]
    %v341 = vld [vmem:[#allocation5 + $0x1ac] sm:$0xf]
    %v342 = vld [vmem:[#allocation5 + $0x1b0] sm:$0xf]
    %v343 = vld [vmem:[#allocation5 + $0x1b4] sm:$0xf]
    %v344 = vld [vmem:[#allocation5 + $0x1b8] sm:$0xf]
    %v345 = vld [vmem:[#allocation5 + $0x1bc] sm:$0xf]
    %v346 = vld [vmem:[#allocation5 + $0x1c0] sm:$0xf]
    %v347 = vld [vmem:[#allocation5 + $0x1c4] sm:$0xf]
    %v348 = vld [vmem:[#allocation5 + $0x1c8] sm:$0xf]
    %v349 = vld [vmem:[#allocation5 + $0x1cc] sm:$0xf]
    %v350 = vld [vmem:[#allocation5 + $0x1d0] sm:$0xf]
    %v351 = vld [vmem:[#allocation5 + $0x1d4] sm:$0xf]
    %v352 = vld [vmem:[#allocation5 + $0x1d8] sm:$0xf]
    %v353 = vld [vmem:[#allocation5 + $0x1dc] sm:$0xf]
    %v354 = vld [vmem:[#allocation5 + $0x1e0] sm:$0xf]
    %v355 = vld [vmem:[#allocation5 + $0x1e4] sm:$0xf]
    %v356 = vld [vmem:[#allocation5 + $0x1e8] sm:$0xf]
    %v357 = vld [vmem:[#allocation5 + $0x1ec] sm:$0xf]
    %v358 = vld [vmem:[#allocation5 + $0x1f0] sm:$0xf]
    %v359 = vld [vmem:[#allocation5 + $0x1f4] sm:$0xf]
    %v360 = vld [vmem:[#allocation5 + $0x1f8] sm:$0xf]
    %v361 = vld [vmem:[#allocation5 + $0x1fc] sm:$0xf]
    %v362 = vld [vmem:[#allocation5 + $0x200] sm:$0xf]
    %v363 = vld [vmem:[#allocation5 + $0x204] sm:$0xf]
    %v364 = vld [vmem:[#allocation5 + $0x208] sm:$0xf]
    %v365 = vld [vmem:[#allocation5 + $0x20c] sm:$0xf]
    %v366 = vld [vmem:[#allocation5 + $0x210] sm:$0xf]
    %v367 = vld [vmem:[#allocation5 + $0x214] sm:$0xf]
    %v368 = vld [vmem:[#allocation5 + $0x218] sm:$0xf]
    %v369 = vld [vmem:[#allocation5 + $0x21c] sm:$0xf]
    %v370 = vld [vmem:[#allocation5 + $0x220] sm:$0xf]
    %v371 = vld [vmem:[#allocation5 + $0x224] sm:$0xf]
    %v372 = vld [vmem:[#allocation5 + $0x228] sm:$0xf]
    %v373 = vld [vmem:[#allocation5 + $0x22c] sm:$0xf]
    %v374 = vld [vmem:[#allocation5 + $0x230] sm:$0xf]
    %v375 = vld [vmem:[#allocation5 + $0x234] sm:$0xf]
    %v376 = vld [vmem:[#allocation5 + $0x238] sm:$0xf]
    %v377 = vld [vmem:[#allocation5 + $0x23c] sm:$0xf]
    %v378 = vld [vmem:[#allocation5 + $0x240] sm:$0xf]
    %v379 = vld [vmem:[#allocation5 + $0x244] sm:$0xf]
    %v380 = vld [vmem:[#allocation5 + $0x248] sm:$0xf]
    %v381 = vld [vmem:[#allocation5 + $0x24c] sm:$0xf]
    %v382 = vld [vmem:[#allocation5 + $0x250] sm:$0xf]
    %v383 = vld [vmem:[#allocation5 + $0x254] sm:$0xf]
    %v384 = vld [vmem:[#allocation5 + $0x258] sm:$0xf]
    %v385 = vld [vmem:[#allocation5 + $0x25c] sm:$0xf]
    %v386 = vld [vmem:[#allocation5 + $0x260] sm:$0xf]
    %v387 = vld [vmem:[#allocation5 + $0x264] sm:$0xf]
    %v388 = vld [vmem:[#allocation5 + $0x268] sm:$0xf]
    %v389 = vld [vmem:[#allocation5 + $0x26c] sm:$0xf]
    %v390 = vld [vmem:[#allocation5 + $0x270] sm:$0xf]
    %v391 = vld [vmem:[#allocation5 + $0x274] sm:$0xf]
    %v392 = vld [vmem:[#allocation5 + $0x278] sm:$0xf]
    %v393 = vld [vmem:[#allocation5 + $0x27c] sm:$0xf]
    %v394 = vld [vmem:[#allocation5 + $0x280] sm:$0xf]
    %v395 = vld [vmem:[#allocation5 + $0x284] sm:$0xf]
    %v396 = vld [vmem:[#allocation5 + $0x288] sm:$0xf]
    %v397 = vld [vmem:[#allocation5 + $0x28c] sm:$0xf]
    %v398 = vld [vmem:[#allocation5 + $0x290] sm:$0xf]
    %v399 = vld [vmem:[#allocation5 + $0x294] sm:$0xf]
    %v400 = vld [vmem:[#allocation5 + $0x298] sm:$0xf]
    %v401 = vld [vmem:[#allocation5 + $0x29c] sm:$0xf]
    %v402 = vld [vmem:[#allocation5 + $0x2a0] sm:$0xf]
    %v403 = vld [vmem:[#allocation5 + $0x2a4] sm:$0xf]
    %v404 = vld [vmem:[#allocation5 + $0x2a8] sm:$0xf]
    %v405 = vld [vmem:[#allocation5 + $0x2ac] sm:$0xf]
    %v406 = vld [vmem:[#allocation5 + $0x2b0] sm:$0xf]
    %v407 = vld [vmem:[#allocation5 + $0x2b4] sm:$0xf]
    %v408 = vld [vmem:[#allocation5 + $0x2b8] sm:$0xf]
    %v409 = vld [vmem:[#allocation5 + $0x2bc] sm:$0xf]
    %v410 = vld [vmem:[#allocation5 + $0x2c0] sm:$0xf]
    %v411 = vld [vmem:[#allocation5 + $0x2c4] sm:$0xf]
    %v412 = vld [vmem:[#allocation5 + $0x2c8] sm:$0xf]
    %v413 = vld [vmem:[#allocation5 + $0x2cc] sm:$0xf]
    %v414 = vld [vmem:[#allocation5 + $0x2d0] sm:$0xf]
    %v415 = vld [vmem:[#allocation5 + $0x2d4] sm:$0xf]
    %v416 = vld [vmem:[#allocation5 + $0x2d8] sm:$0xf]
    %v417 = vld [vmem:[#allocation5 + $0x2dc] sm:$0xf]
    %v418 = vld [vmem:[#allocation5 + $0x2e0] sm:$0xf]
    %v419 = vld [vmem:[#allocation5 + $0x2e4] sm:$0xf]
    %v420 = vld [vmem:[#allocation5 + $0x2e8] sm:$0xf]
    %v421 = vld [vmem:[#allocation5 + $0x2ec] sm:$0xf]
    %v422 = vld [vmem:[#allocation5 + $0x2f0] sm:$0xf]
    %v423 = vld [vmem:[#allocation5 + $0x2f4] sm:$0xf]
    %v424 = vld [vmem:[#allocation5 + $0x2f8] sm:$0xf]
    %v425 = vld [vmem:[#allocation5 + $0x2fc] sm:$0xf]
    %v426 = vld [vmem:[#allocation5 + $0x300] sm:$0xf]
    %v427 = vld [vmem:[#allocation5 + $0x304] sm:$0xf]
    %v428 = vld [vmem:[#allocation5 + $0x308] sm:$0xf]
    %v429 = vld [vmem:[#allocation5 + $0x30c] sm:$0xf]
    %v430 = vld [vmem:[#allocation5 + $0x310] sm:$0xf]
    %v431 = vld [vmem:[#allocation5 + $0x314] sm:$0xf]
    %v432 = vld [vmem:[#allocation5 + $0x318] sm:$0xf]
    %v433 = vld [vmem:[#allocation5 + $0x31c] sm:$0xf]
    %v434 = vld [vmem:[#allocation5 + $0x320] sm:$0xf]
    %v435 = vld [vmem:[#allocation5 + $0x324] sm:$0xf]
    %v436 = vld [vmem:[#allocation5 + $0x328] sm:$0xf]
    %v437 = vld [vmem:[#allocation5 + $0x32c] sm:$0xf]
    %v438 = vld [vmem:[#allocation5 + $0x330] sm:$0xf]
    %v439 = vld [vmem:[#allocation5 + $0x334] sm:$0xf]
    %v440 = vld [vmem:[#allocation5 + $0x338] sm:$0xf]
    %v441 = vld [vmem:[#allocation5 + $0x33c] sm:$0xf]
    %v442 = vld [vmem:[#allocation5 + $0x340] sm:$0xf]
    %v443 = vld [vmem:[#allocation5 + $0x344] sm:$0xf]
    %v444 = vld [vmem:[#allocation5 + $0x348] sm:$0xf]
    %v445 = vld [vmem:[#allocation5 + $0x34c] sm:$0xf]
    %v446 = vld [vmem:[#allocation5 + $0x350] sm:$0xf]
    %v447 = vld [vmem:[#allocation5 + $0x354] sm:$0xf]
    %v448 = vld [vmem:[#allocation5 + $0x358] sm:$0xf]
    %v449 = vld [vmem:[#allocation5 + $0x35c] sm:$0xf]
    %v450 = vld [vmem:[#allocation5 + $0x360] sm:$0xf]
    %v451 = vld [vmem:[#allocation5 + $0x364] sm:$0xf]
    %v452 = vld [vmem:[#allocation5 + $0x368] sm:$0xf]
    %v453 = vld [vmem:[#allocation5 + $0x36c] sm:$0xf]
    %v454 = vld [vmem:[#allocation5 + $0x370] sm:$0xf]
    %v455 = vld [vmem:[#allocation5 + $0x374] sm:$0xf]
    %v456 = vld [vmem:[#allocation5 + $0x378] sm:$0xf]
    %v457 = vld [vmem:[#allocation5 + $0x37c] sm:$0xf]
    %v458 = vld [vmem:[#allocation5 + $0x380] sm:$0xf]
    %v459 = vld [vmem:[#allocation5 + $0x384] sm:$0xf]
    %v460 = vld [vmem:[#allocation5 + $0x388] sm:$0xf]
    %v461 = vld [vmem:[#allocation5 + $0x38c] sm:$0xf]
    %v462 = vld [vmem:[#allocation5 + $0x390] sm:$0xf]
    %v463 = vld [vmem:[#allocation5 + $0x394] sm:$0xf]
    %v464 = vld [vmem:[#allocation5 + $0x398] sm:$0xf]
    %v465 = vld [vmem:[#allocation5 + $0x39c] sm:$0xf]
    %v466 = vld [vmem:[#allocation5 + $0x3a0] sm:$0xf]
    %v467 = vld [vmem:[#allocation5 + $0x3a4] sm:$0xf]
    %v468 = vld [vmem:[#allocation5 + $0x3a8] sm:$0xf]
    %v469 = vld [vmem:[#allocation5 + $0x3ac] sm:$0xf]
    %v470 = vld [vmem:[#allocation5 + $0x3b0] sm:$0xf]
    %v471 = vld [vmem:[#allocation5 + $0x3b4] sm:$0xf]
    %v472 = vld [vmem:[#allocation5 + $0x3b8] sm:$0xf]
    %v473 = vld [vmem:[#allocation5 + $0x3bc] sm:$0xf]
    %v474 = vld [vmem:[#allocation5 + $0x3c0] sm:$0xf]
    %v475 = vld [vmem:[#allocation5 + $0x3c4] sm:$0xf]
    %v476 = vld [vmem:[#allocation5 + $0x3c8] sm:$0xf]
    %v477 = vld [vmem:[#allocation5 + $0x3cc] sm:$0xf]
    %v478 = vld [vmem:[#allocation5 + $0x3d0] sm:$0xf]
    %v479 = vld [vmem:[#allocation5 + $0x3d4] sm:$0xf]
    %v480 = vld [vmem:[#allocation5 + $0x3d8] sm:$0xf]
    %v481 = vld [vmem:[#allocation5 + $0x3dc] sm:$0xf]
    %v482 = vld [vmem:[#allocation5 + $0x3e0] sm:$0xf]
    %v483 = vld [vmem:[#allocation5 + $0x3e4] sm:$0xf]
    %v484 = vld [vmem:[#allocation5 + $0x3e8] sm:$0xf]
    %v485 = vld [vmem:[#allocation5 + $0x3ec] sm:$0xf]
    %v486 = vld [vmem:[#allocation5 + $0x3f0] sm:$0xf]
    %v487 = vld [vmem:[#allocation5 + $0x3f4] sm:$0xf]
    %v488 = vld [vmem:[#allocation5 + $0x3f8] sm:$0xf]
    %v489 = vld [vmem:[#allocation5 + $0x3fc] sm:$0xf]
    %v490 = vld [vmem:[#allocation5 + $0x400] sm:$0xf]
    %v491 = vld [vmem:[#allocation5 + $0x404] sm:$0xf]
    %v492 = vld [vmem:[#allocation5 + $0x408] sm:$0xf]
    %v493 = vld [vmem:[#allocation5 + $0x40c] sm:$0xf]
    %v494 = vld [vmem:[#allocation5 + $0x410] sm:$0xf]
    %v495 = vld [vmem:[#allocation5 + $0x414] sm:$0xf]
    %v496 = vld [vmem:[#allocation5 + $0x418] sm:$0xf]
    %v497 = vld [vmem:[#allocation5 + $0x41c] sm:$0xf]
    %v498 = vld [vmem:[#allocation5 + $0x420] sm:$0xf]
    %v499 = vld [vmem:[#allocation5 + $0x424] sm:$0xf]
    %v500 = vld [vmem:[#allocation5 + $0x428] sm:$0xf]
    %v501 = vld [vmem:[#allocation5 + $0x42c] sm:$0xf]
    %v502 = vld [vmem:[#allocation5 + $0x430] sm:$0xf]
    %v503 = vld [vmem:[#allocation5 + $0x434] sm:$0xf]
    %v504 = vld [vmem:[#allocation5 + $0x438] sm:$0xf]
    %v505 = vld [vmem:[#allocation5 + $0x43c] sm:$0xf]
    %v506 = vld [vmem:[#allocation5 + $0x440] sm:$0xf]
    %v507 = vld [vmem:[#allocation5 + $0x444] sm:$0xf]
    %v508 = vld [vmem:[#allocation5 + $0x448] sm:$0xf]
    %v509 = vld [vmem:[#allocation5 + $0x44c] sm:$0xf]
    %v510 = vld [vmem:[#allocation5 + $0x450] sm:$0xf]
    %v511 = vld [vmem:[#allocation5 + $0x454] sm:$0xf]
    %v512 = vld [vmem:[#allocation5 + $0x458] sm:$0xf]
    %v513 = vld [vmem:[#allocation5 + $0x45c] sm:$0xf]
    %v514 = vld [vmem:[#allocation5 + $0x460] sm:$0xf]
    %v515 = vld [vmem:[#allocation5 + $0x464] sm:$0xf]
    %v516 = vld [vmem:[#allocation5 + $0x468] sm:$0xf]
    %v517 = vld [vmem:[#allocation5 + $0x46c] sm:$0xf]
    %v518 = vld [vmem:[#allocation5 + $0x470] sm:$0xf]
    %v519 = vld [vmem:[#allocation5 + $0x474] sm:$0xf]
    %v520 = vld [vmem:[#allocation5 + $0x478] sm:$0xf]
    %v521 = vld [vmem:[#allocation5 + $0x47c] sm:$0xf]
    %v522 = vld [vmem:[#allocation5 + $0x480] sm:$0xf]
    %v523 = vld [vmem:[#allocation5 + $0x484] sm:$0xf]
    %v524 = vld [vmem:[#allocation5 + $0x488] sm:$0xf]
    %v525 = vld [vmem:[#allocation5 + $0x48c] sm:$0xf]
    %v526 = vld [vmem:[#allocation5 + $0x490] sm:$0xf]
    %v527 = vld [vmem:[#allocation5 + $0x494] sm:$0xf]
    %v528 = vld [vmem:[#allocation5 + $0x498] sm:$0xf]
    %v529 = vld [vmem:[#allocation5 + $0x49c] sm:$0xf]
    %v530 = vld [vmem:[#allocation5 + $0x4a0] sm:$0xf]
    %v531 = vld [vmem:[#allocation5 + $0x4a4] sm:$0xf]
    %v532 = vld [vmem:[#allocation5 + $0x4a8] sm:$0xf]
    %v533 = vld [vmem:[#allocation5 + $0x4ac] sm:$0xf]
    %v534 = vld [vmem:[#allocation5 + $0x4b0] sm:$0xf]
    %v535 = vld [vmem:[#allocation5 + $0x4b4] sm:$0xf]
    %v536 = vld [vmem:[#allocation5 + $0x4b8] sm:$0xf]
    %v537 = vld [vmem:[#allocation5 + $0x4bc] sm:$0xf]
    %v538 = vld [vmem:[#allocation5 + $0x4c0] sm:$0xf]
    %v539 = vld [vmem:[#allocation5 + $0x4c4] sm:$0xf]
    %v540 = vld [vmem:[#allocation5 + $0x4c8] sm:$0xf]
    %v541 = vld [vmem:[#allocation5 + $0x4cc] sm:$0xf]
    %v542 = vld [vmem:[#allocation5 + $0x4d0] sm:$0xf]
    %v543 = vld [vmem:[#allocation5 + $0x4d4] sm:$0xf]
    %v544 = vld [vmem:[#allocation5 + $0x4d8] sm:$0xf]
    %v545 = vld [vmem:[#allocation5 + $0x4dc] sm:$0xf]
    %v546 = vld [vmem:[#allocation5 + $0x4e0] sm:$0xf]
    %v547 = vld [vmem:[#allocation5 + $0x4e4] sm:$0xf]
    %v548 = vld [vmem:[#allocation5 + $0x4e8] sm:$0xf]
    %v549 = vld [vmem:[#allocation5 + $0x4ec] sm:$0xf]
    %v550 = vld [vmem:[#allocation5 + $0x4f0] sm:$0xf]
    %v551 = vld [vmem:[#allocation5 + $0x4f4] sm:$0xf]
    %v552 = vld [vmem:[#allocation5 + $0x4f8] sm:$0xf]
    %v553 = vld [vmem:[#allocation5 + $0x4fc] sm:$0xf]
    %v554 = vld [vmem:[#allocation5 + $0x500] sm:$0xf]
    %v555 = vld [vmem:[#allocation5 + $0x504] sm:$0xf]
    %v556 = vld [vmem:[#allocation5 + $0x508] sm:$0xf]
    %v557 = vld [vmem:[#allocation5 + $0x50c] sm:$0xf]
    %v558 = vld [vmem:[#allocation5 + $0x510] sm:$0xf]
    %v559 = vld [vmem:[#allocation5 + $0x514] sm:$0xf]
    %v560 = vld [vmem:[#allocation5 + $0x518] sm:$0xf]
    %v561 = vld [vmem:[#allocation5 + $0x51c] sm:$0xf]
    %v562 = vld [vmem:[#allocation5 + $0x520] sm:$0xf]
    %v563 = vld [vmem:[#allocation5 + $0x524] sm:$0xf]
    %v564 = vld [vmem:[#allocation5 + $0x528] sm:$0xf]
    %v565 = vld [vmem:[#allocation5 + $0x52c] sm:$0xf]
    %v566 = vld [vmem:[#allocation5 + $0x530] sm:$0xf]
    %v567 = vld [vmem:[#allocation5 + $0x534] sm:$0xf]
    %v568 = vld [vmem:[#allocation5 + $0x538] sm:$0xf]
    %v569 = vld [vmem:[#allocation5 + $0x53c] sm:$0xf]
    %v570 = vld [vmem:[#allocation5 + $0x540] sm:$0xf]
    %v571 = vld [vmem:[#allocation5 + $0x544] sm:$0xf]
    %v572 = vld [vmem:[#allocation5 + $0x548] sm:$0xf]
    %v573 = vld [vmem:[#allocation5 + $0x54c] sm:$0xf]
    %v574 = vld [vmem:[#allocation5 + $0x550] sm:$0xf]
    %v575 = vld [vmem:[#allocation5 + $0x554] sm:$0xf]
    %v576 = vld [vmem:[#allocation5 + $0x558] sm:$0xf]
    %v577 = vld [vmem:[#allocation5 + $0x55c] sm:$0xf]
    %v578 = vld [vmem:[#allocation5 + $0x560] sm:$0xf]
    %v579 = vld [vmem:[#allocation5 + $0x564] sm:$0xf]
    %v580 = vld [vmem:[#allocation5 + $0x568] sm:$0xf]
    %v581 = vld [vmem:[#allocation5 + $0x56c] sm:$0xf]
    %v582 = vld [vmem:[#allocation5 + $0x570] sm:$0xf]
    %v583 = vld [vmem:[#allocation5 + $0x574] sm:$0xf]
    %v584 = vld [vmem:[#allocation5 + $0x578] sm:$0xf]
    %v585 = vld [vmem:[#allocation5 + $0x57c] sm:$0xf]
    %v586 = vld [vmem:[#allocation5 + $0x580] sm:$0xf]
    %v587 = vld [vmem:[#allocation5 + $0x584] sm:$0xf]
    %v588 = vld [vmem:[#allocation5 + $0x588] sm:$0xf]
    %v589 = vld [vmem:[#allocation5 + $0x58c] sm:$0xf]
    %v590 = vld [vmem:[#allocation5 + $0x590] sm:$0xf]
    %v591 = vld [vmem:[#allocation5 + $0x594] sm:$0xf]
    %v592 = vld [vmem:[#allocation5 + $0x598] sm:$0xf]
    %v593 = vld [vmem:[#allocation5 + $0x59c] sm:$0xf]
    %v594 = vld [vmem:[#allocation5 + $0x5a0] sm:$0xf]
    %v595 = vld [vmem:[#allocation5 + $0x5a4] sm:$0xf]
    %v596 = vld [vmem:[#allocation5 + $0x5a8] sm:$0xf]
    %v597 = vld [vmem:[#allocation5 + $0x5ac] sm:$0xf]
    %v598 = vld [vmem:[#allocation5 + $0x5b0] sm:$0xf]
    %v599 = vld [vmem:[#allocation5 + $0x5b4] sm:$0xf]
    %v600 = vld [vmem:[#allocation5 + $0x5b8] sm:$0xf]
    %v601 = vld [vmem:[#allocation5 + $0x5bc] sm:$0xf]
    %v602 = vld [vmem:[#allocation5 + $0x5c0] sm:$0xf]
    %v603 = vld [vmem:[#allocation5 + $0x5c4] sm:$0xf]
    %v604 = vld [vmem:[#allocation5 + $0x5c8] sm:$0xf]
    %v605 = vld [vmem:[#allocation5 + $0x5cc] sm:$0xf]
    %v606 = vld [vmem:[#allocation5 + $0x5d0] sm:$0xf]
    %v607 = vld [vmem:[#allocation5 + $0x5d4] sm:$0xf]
    %v608 = vld [vmem:[#allocation5 + $0x5d8] sm:$0xf]
    %v609 = vld [vmem:[#allocation5 + $0x5dc] sm:$0xf]
    %v610 = vld [vmem:[#allocation5 + $0x5e0] sm:$0xf]
    %v611 = vld [vmem:[#allocation5 + $0x5e4] sm:$0xf]
    %v612 = vld [vmem:[#allocation5 + $0x5e8] sm:$0xf]
    %v613 = vld [vmem:[#allocation5 + $0x5ec] sm:$0xf]
    %v614 = vld [vmem:[#allocation5 + $0x5f0] sm:$0xf]
    %v615 = vld [vmem:[#allocation5 + $0x5f4] sm:$0xf]
    %v616 = vld [vmem:[#allocation5 + $0x5f8] sm:$0xf]
    %v617 = vld [vmem:[#allocation5 + $0x5fc] sm:$0xf]
    %v1002 = vunpack.c.l.b16 %v234
    %v1003 = vunpack.c.l.b16 %v235
    %v1004 = vunpack.c.l.b16 %v236
    %v1005 = vunpack.c.l.b16 %v237
    %v1006 = vunpack.c.l.b16 %v238
    %v1007 = vunpack.c.l.b16 %v239
    %v1008 = vunpack.c.l.b16 %v240
    %v1009 = vunpack.c.l.b16 %v241
    %v1010 = vunpack.c.l.b16 %v242
    %v1011 = vunpack.c.l.b16 %v243
    %v1012 = vunpack.c.l.b16 %v244
    %v1013 = vunpack.c.l.b16 %v245
    %v1014 = vunpack.c.l.b16 %v246
    %v1015 = vunpack.c.l.b16 %v247
    %v1016 = vunpack.c.l.b16 %v248
    %v1017 = vunpack.c.l.b16 %v249
    %v1018 = vunpack.c.l.b16 %v250
    %v1019 = vunpack.c.l.b16 %v251
    %v1020 = vunpack.c.l.b16 %v252
    %v1021 = vunpack.c.l.b16 %v253
    %v1022 = vunpack.c.l.b16 %v254
    %v1023 = vunpack.c.l.b16 %v255
    %v1024 = vunpack.c.l.b16 %v256
    %v1025 = vunpack.c.l.b16 %v257
    %v1026 = vunpack.c.l.b16 %v258
    %v1027 = vunpack.c.l.b16 %v259
    %v1028 = vunpack.c.l.b16 %v260
    %v1029 = vunpack.c.l.b16 %v261
    %v1030 = vunpack.c.l.b16 %v262
    %v1031 = vunpack.c.l.b16 %v263
    %v1032 = vunpack.c.l.b16 %v264
    %v1033 = vunpack.c.l.b16 %v265
    %v1034 = vunpack.c.l.b16 %v266
    %v1035 = vunpack.c.l.b16 %v267
    %v1036 = vunpack.c.l.b16 %v268
    %v1037 = vunpack.c.l.b16 %v269
    %v1038 = vunpack.c.l.b16 %v270
    %v1039 = vunpack.c.l.b16 %v271
    %v1040 = vunpack.c.l.b16 %v272
    %v1041 = vunpack.c.l.b16 %v273
    %v1042 = vunpack.c.l.b16 %v274
    %v1043 = vunpack.c.l.b16 %v275
    %v1044 = vunpack.c.l.b16 %v276
    %v1045 = vunpack.c.l.b16 %v277
    %v1046 = vunpack.c.l.b16 %v278
    %v1047 = vunpack.c.l.b16 %v279
    %v1048 = vunpack.c.l.b16 %v280
    %v1049 = vunpack.c.l.b16 %v281
    %v1050 = vunpack.c.l.b16 %v282
    %v1051 = vunpack.c.l.b16 %v283
    %v1052 = vunpack.c.l.b16 %v284
    %v1053 = vunpack.c.l.b16 %v285
    %v1054 = vunpack.c.l.b16 %v286
    %v1055 = vunpack.c.l.b16 %v287
    %v1056 = vunpack.c.l.b16 %v288
    %v1057 = vunpack.c.l.b16 %v289
    %v1058 = vunpack.c.l.b16 %v290
    %v1059 = vunpack.c.l.b16 %v291
    %v1060 = vunpack.c.l.b16 %v292
    %v1061 = vunpack.c.l.b16 %v293
    %v1062 = vunpack.c.l.b16 %v294
    %v1063 = vunpack.c.l.b16 %v295
    %v1064 = vunpack.c.l.b16 %v296
    %v1065 = vunpack.c.l.b16 %v297
    %v1066 = vunpack.c.l.b16 %v298
    %v1067 = vunpack.c.l.b16 %v299
    %v1068 = vunpack.c.l.b16 %v300
    %v1069 = vunpack.c.l.b16 %v301
    %v1070 = vunpack.c.l.b16 %v302
    %v1071 = vunpack.c.l.b16 %v303
    %v1072 = vunpack.c.l.b16 %v304
    %v1073 = vunpack.c.l.b16 %v305
    %v1074 = vunpack.c.l.b16 %v306
    %v1075 = vunpack.c.l.b16 %v307
    %v1076 = vunpack.c.l.b16 %v308
    %v1077 = vunpack.c.l.b16 %v309
    %v1078 = vunpack.c.l.b16 %v310
    %v1079 = vunpack.c.l.b16 %v311
    %v1080 = vunpack.c.l.b16 %v312
    %v1081 = vunpack.c.l.b16 %v313
    %v1082 = vunpack.c.l.b16 %v314
    %v1083 = vunpack.c.l.b16 %v315
    %v1084 = vunpack.c.l.b16 %v316
    %v1085 = vunpack.c.l.b16 %v317
    %v1086 = vunpack.c.l.b16 %v318
    %v1087 = vunpack.c.l.b16 %v319
    %v1088 = vunpack.c.l.b16 %v320
    %v1089 = vunpack.c.l.b16 %v321
    %v1090 = vunpack.c.l.b16 %v322
    %v1091 = vunpack.c.l.b16 %v323
    %v1092 = vunpack.c.l.b16 %v324
    %v1093 = vunpack.c.l.b16 %v325
    %v1094 = vunpack.c.l.b16 %v326
    %v1095 = vunpack.c.l.b16 %v327
    %v1096 = vunpack.c.l.b16 %v328
    %v1097 = vunpack.c.l.b16 %v329
    %v1098 = vunpack.c.l.b16 %v330
    %v1099 = vunpack.c.l.b16 %v331
    %v1100 = vunpack.c.l.b16 %v332
    %v1101 = vunpack.c.l.b16 %v333
    %v1102 = vunpack.c.l.b16 %v334
    %v1103 = vunpack.c.l.b16 %v335
    %v1104 = vunpack.c.l.b16 %v336
    %v1105 = vunpack.c.l.b16 %v337
    %v1106 = vunpack.c.l.b16 %v338
    %v1107 = vunpack.c.l.b16 %v339
    %v1108 = vunpack.c.l.b16 %v340
    %v1109 = vunpack.c.l.b16 %v341
    %v1110 = vunpack.c.l.b16 %v342
    %v1111 = vunpack.c.l.b16 %v343
    %v1112 = vunpack.c.l.b16 %v344
    %v1113 = vunpack.c.l.b16 %v345
    %v1114 = vunpack.c.l.b16 %v346
    %v1115 = vunpack.c.l.b16 %v347
    %v1116 = vunpack.c.l.b16 %v348
    %v1117 = vunpack.c.l.b16 %v349
    %v1118 = vunpack.c.l.b16 %v350
    %v1119 = vunpack.c.l.b16 %v351
    %v1120 = vunpack.c.l.b16 %v352
    %v1121 = vunpack.c.l.b16 %v353
    %v1122 = vunpack.c.l.b16 %v354
    %v1123 = vunpack.c.l.b16 %v355
    %v1124 = vunpack.c.l.b16 %v356
    %v1125 = vunpack.c.l.b16 %v357
    %v1126 = vunpack.c.l.b16 %v358
    %v1127 = vunpack.c.l.b16 %v359
    %v1128 = vunpack.c.l.b16 %v360
    %v1129 = vunpack.c.l.b16 %v361
    %v1130 = vunpack.c.l.b16 %v362
    %v1131 = vunpack.c.l.b16 %v363
    %v1132 = vunpack.c.l.b16 %v364
    %v1133 = vunpack.c.l.b16 %v365
    %v1134 = vunpack.c.l.b16 %v366
    %v1135 = vunpack.c.l.b16 %v367
    %v1136 = vunpack.c.l.b16 %v368
    %v1137 = vunpack.c.l.b16 %v369
    %v1138 = vunpack.c.l.b16 %v370
    %v1139 = vunpack.c.l.b16 %v371
    %v1140 = vunpack.c.l.b16 %v372
    %v1141 = vunpack.c.l.b16 %v373
    %v1142 = vunpack.c.l.b16 %v374
    %v1143 = vunpack.c.l.b16 %v375
    %v1144 = vunpack.c.l.b16 %v376
    %v1145 = vunpack.c.l.b16 %v377
    %v1146 = vunpack.c.l.b16 %v378
    %v1147 = vunpack.c.l.b16 %v379
    %v1148 = vunpack.c.l.b16 %v380
    %v1149 = vunpack.c.l.b16 %v381
    %v1150 = vunpack.c.l.b16 %v382
    %v1151 = vunpack.c.l.b16 %v383
    %v1152 = vunpack.c.l.b16 %v384
    %v1153 = vunpack.c.l.b16 %v385
    %v1154 = vunpack.c.l.b16 %v386
    %v1155 = vunpack.c.l.b16 %v387
    %v1156 = vunpack.c.l.b16 %v388
    %v1157 = vunpack.c.l.b16 %v389
    %v1158 = vunpack.c.l.b16 %v390
    %v1159 = vunpack.c.l.b16 %v391
    %v1160 = vunpack.c.l.b16 %v392
    %v1161 = vunpack.c.l.b16 %v393
    %v1162 = vunpack.c.l.b16 %v394
    %v1163 = vunpack.c.l.b16 %v395
    %v1164 = vunpack.c.l.b16 %v396
    %v1165 = vunpack.c.l.b16 %v397
    %v1166 = vunpack.c.l.b16 %v398
    %v1167 = vunpack.c.l.b16 %v399
    %v1168 = vunpack.c.l.b16 %v400
    %v1169 = vunpack.c.l.b16 %v401
    %v1170 = vunpack.c.l.b16 %v402
    %v1171 = vunpack.c.l.b16 %v403
    %v1172 = vunpack.c.l.b16 %v404
    %v1173 = vunpack.c.l.b16 %v405
    %v1174 = vunpack.c.l.b16 %v406
    %v1175 = vunpack.c.l.b16 %v407
    %v1176 = vunpack.c.l.b16 %v408
    %v1177 = vunpack.c.l.b16 %v409
    %v1178 = vunpack.c.l.b16 %v410
    %v1179 = vunpack.c.l.b16 %v411
    %v1180 = vunpack.c.l.b16 %v412
    %v1181 = vunpack.c.l.b16 %v413
    %v1182 = vunpack.c.l.b16 %v414
    %v1183 = vunpack.c.l.b16 %v415
    %v1184 = vunpack.c.l.b16 %v416
    %v1185 = vunpack.c.l.b16 %v417
    %v1186 = vunpack.c.l.b16 %v418
    %v1187 = vunpack.c.l.b16 %v419
    %v1188 = vunpack.c.l.b16 %v420
    %v1189 = vunpack.c.l.b16 %v421
    %v1190 = vunpack.c.l.b16 %v422
    %v1191 = vunpack.c.l.b16 %v423
    %v1192 = vunpack.c.l.b16 %v424
    %v1193 = vunpack.c.l.b16 %v425
    %v1194 = vunpack.c.l.b16 %v426
    %v1195 = vunpack.c.l.b16 %v427
    %v1196 = vunpack.c.l.b16 %v428
    %v1197 = vunpack.c.l.b16 %v429
    %v1198 = vunpack.c.l.b16 %v430
    %v1199 = vunpack.c.l.b16 %v431
    %v1200 = vunpack.c.l.b16 %v432
    %v1201 = vunpack.c.l.b16 %v433
    %v1202 = vunpack.c.l.b16 %v434
    %v1203 = vunpack.c.l.b16 %v435
    %v1204 = vunpack.c.l.b16 %v436
    %v1205 = vunpack.c.l.b16 %v437
    %v1206 = vunpack.c.l.b16 %v438
    %v1207 = vunpack.c.l.b16 %v439
    %v1208 = vunpack.c.l.b16 %v440
    %v1209 = vunpack.c.l.b16 %v441
    %v1210 = vunpack.c.l.b16 %v442
    %v1211 = vunpack.c.l.b16 %v443
    %v1212 = vunpack.c.l.b16 %v444
    %v1213 = vunpack.c.l.b16 %v445
    %v1214 = vunpack.c.l.b16 %v446
    %v1215 = vunpack.c.l.b16 %v447
    %v1216 = vunpack.c.l.b16 %v448
    %v1217 = vunpack.c.l.b16 %v449
    %v1218 = vunpack.c.l.b16 %v450
    %v1219 = vunpack.c.l.b16 %v451
    %v1220 = vunpack.c.l.b16 %v452
    %v1221 = vunpack.c.l.b16 %v453
    %v1222 = vunpack.c.l.b16 %v454
    %v1223 = vunpack.c.l.b16 %v455
    %v1224 = vunpack.c.l.b16 %v456
    %v1225 = vunpack.c.l.b16 %v457
    %v1226 = vunpack.c.l.b16 %v458
    %v1227 = vunpack.c.l.b16 %v459
    %v1228 = vunpack.c.l.b16 %v460
    %v1229 = vunpack.c.l.b16 %v461
    %v1230 = vunpack.c.l.b16 %v462
    %v1231 = vunpack.c.l.b16 %v463
    %v1232 = vunpack.c.l.b16 %v464
    %v1233 = vunpack.c.l.b16 %v465
    %v1234 = vunpack.c.l.b16 %v466
    %v1235 = vunpack.c.l.b16 %v467
    %v1236 = vunpack.c.l.b16 %v468
    %v1237 = vunpack.c.l.b16 %v469
    %v1238 = vunpack.c.l.b16 %v470
    %v1239 = vunpack.c.l.b16 %v471
    %v1240 = vunpack.c.l.b16 %v472
    %v1241 = vunpack.c.l.b16 %v473
    %v1242 = vunpack.c.l.b16 %v474
    %v1243 = vunpack.c.l.b16 %v475
    %v1244 = vunpack.c.l.b16 %v476
    %v1245 = vunpack.c.l.b16 %v477
    %v1246 = vunpack.c.l.b16 %v478
    %v1247 = vunpack.c.l.b16 %v479
    %v1248 = vunpack.c.l.b16 %v480
    %v1249 = vunpack.c.l.b16 %v481
    %v1250 = vunpack.c.l.b16 %v482
    %v1251 = vunpack.c.l.b16 %v483
    %v1252 = vunpack.c.l.b16 %v484
    %v1253 = vunpack.c.l.b16 %v485
    %v1254 = vunpack.c.l.b16 %v486
    %v1255 = vunpack.c.l.b16 %v487
    %v1256 = vunpack.c.l.b16 %v488
    %v1257 = vunpack.c.l.b16 %v489
    %v1258 = vunpack.c.l.b16 %v490
    %v1259 = vunpack.c.l.b16 %v491
    %v1260 = vunpack.c.l.b16 %v492
    %v1261 = vunpack.c.l.b16 %v493
    %v1262 = vunpack.c.l.b16 %v494
    %v1263 = vunpack.c.l.b16 %v495
    %v1264 = vunpack.c.l.b16 %v496
    %v1265 = vunpack.c.l.b16 %v497
    %v1266 = vunpack.c.l.b16 %v498
    %v1267 = vunpack.c.l.b16 %v499
    %v1268 = vunpack.c.l.b16 %v500
    %v1269 = vunpack.c.l.b16 %v501
    %v1270 = vunpack.c.l.b16 %v502
    %v1271 = vunpack.c.l.b16 %v503
    %v1272 = vunpack.c.l.b16 %v504
    %v1273 = vunpack.c.l.b16 %v505
    %v1274 = vunpack.c.l.b16 %v506
    %v1275 = vunpack.c.l.b16 %v507
    %v1276 = vunpack.c.l.b16 %v508
    %v1277 = vunpack.c.l.b16 %v509
    %v1278 = vunpack.c.l.b16 %v510
    %v1279 = vunpack.c.l.b16 %v511
    %v1280 = vunpack.c.l.b16 %v512
    %v1281 = vunpack.c.l.b16 %v513
    %v1282 = vunpack.c.l.b16 %v514
    %v1283 = vunpack.c.l.b16 %v515
    %v1284 = vunpack.c.l.b16 %v516
    %v1285 = vunpack.c.l.b16 %v517
    %v1286 = vunpack.c.l.b16 %v518
    %v1287 = vunpack.c.l.b16 %v519
    %v1288 = vunpack.c.l.b16 %v520
    %v1289 = vunpack.c.l.b16 %v521
    %v1290 = vunpack.c.l.b16 %v522
    %v1291 = vunpack.c.l.b16 %v523
    %v1292 = vunpack.c.l.b16 %v524
    %v1293 = vunpack.c.l.b16 %v525
    %v1294 = vunpack.c.l.b16 %v526
    %v1295 = vunpack.c.l.b16 %v527
    %v1296 = vunpack.c.l.b16 %v528
    %v1297 = vunpack.c.l.b16 %v529
    %v1298 = vunpack.c.l.b16 %v530
    %v1299 = vunpack.c.l.b16 %v531
    %v1300 = vunpack.c.l.b16 %v532
    %v1301 = vunpack.c.l.b16 %v533
    %v1302 = vunpack.c.l.b16 %v534
    %v1303 = vunpack.c.l.b16 %v535
    %v1304 = vunpack.c.l.b16 %v536
    %v1305 = vunpack.c.l.b16 %v537
    %v1306 = vunpack.c.l.b16 %v538
    %v1307 = vunpack.c.l.b16 %v539
    %v1308 = vunpack.c.l.b16 %v540
    %v1309 = vunpack.c.l.b16 %v541
    %v1310 = vunpack.c.l.b16 %v542
    %v1311 = vunpack.c.l.b16 %v543
    %v1312 = vunpack.c.l.b16 %v544
    %v1313 = vunpack.c.l.b16 %v545
    %v1314 = vunpack.c.l.b16 %v546
    %v1315 = vunpack.c.l.b16 %v547
    %v1316 = vunpack.c.l.b16 %v548
    %v1317 = vunpack.c.l.b16 %v549
    %v1318 = vunpack.c.l.b16 %v550
    %v1319 = vunpack.c.l.b16 %v551
    %v1320 = vunpack.c.l.b16 %v552
    %v1321 = vunpack.c.l.b16 %v553
    %v1322 = vunpack.c.l.b16 %v554
    %v1323 = vunpack.c.l.b16 %v555
    %v1324 = vunpack.c.l.b16 %v556
    %v1325 = vunpack.c.l.b16 %v557
    %v1326 = vunpack.c.l.b16 %v558
    %v1327 = vunpack.c.l.b16 %v559
    %v1328 = vunpack.c.l.b16 %v560
    %v1329 = vunpack.c.l.b16 %v561
    %v1330 = vunpack.c.l.b16 %v562
    %v1331 = vunpack.c.l.b16 %v563
    %v1332 = vunpack.c.l.b16 %v564
    %v1333 = vunpack.c.l.b16 %v565
    %v1334 = vunpack.c.l.b16 %v566
    %v1335 = vunpack.c.l.b16 %v567
    %v1336 = vunpack.c.l.b16 %v568
    %v1337 = vunpack.c.l.b16 %v569
    %v1338 = vunpack.c.l.b16 %v570
    %v1339 = vunpack.c.l.b16 %v571
    %v1340 = vunpack.c.l.b16 %v572
    %v1341 = vunpack.c.l.b16 %v573
    %v1342 = vunpack.c.l.b16 %v574
    %v1343 = vunpack.c.l.b16 %v575
    %v1344 = vunpack.c.l.b16 %v576
    %v1345 = vunpack.c.l.b16 %v577
    %v1346 = vunpack.c.l.b16 %v578
    %v1347 = vunpack.c.l.b16 %v579
    %v1348 = vunpack.c.l.b16 %v580
    %v1349 = vunpack.c.l.b16 %v581
    %v1350 = vunpack.c.l.b16 %v582
    %v1351 = vunpack.c.l.b16 %v583
    %v1352 = vunpack.c.l.b16 %v584
    %v1353 = vunpack.c.l.b16 %v585
    %v1354 = vunpack.c.l.b16 %v586
    %v1355 = vunpack.c.l.b16 %v587
    %v1356 = vunpack.c.l.b16 %v588
    %v1357 = vunpack.c.l.b16 %v589
    %v1358 = vunpack.c.l.b16 %v590
    %v1359 = vunpack.c.l.b16 %v591
    %v1360 = vunpack.c.l.b16 %v592
    %v1361 = vunpack.c.l.b16 %v593
    %v1362 = vunpack.c.l.b16 %v594
    %v1363 = vunpack.c.l.b16 %v595
    %v1364 = vunpack.c.l.b16 %v596
    %v1365 = vunpack.c.l.b16 %v597
    %v1366 = vunpack.c.l.b16 %v598
    %v1367 = vunpack.c.l.b16 %v599
    %v1368 = vunpack.c.l.b16 %v600
    %v1369 = vunpack.c.l.b16 %v601
    %v1370 = vunpack.c.l.b16 %v602
    %v1371 = vunpack.c.l.b16 %v603
    %v1372 = vunpack.c.l.b16 %v604
    %v1373 = vunpack.c.l.b16 %v605
    %v1374 = vunpack.c.l.b16 %v606
    %v1375 = vunpack.c.l.b16 %v607
    %v1376 = vunpack.c.l.b16 %v608
    %v1377 = vunpack.c.l.b16 %v609
    %v1378 = vunpack.c.l.b16 %v610
    %v1379 = vunpack.c.l.b16 %v611
    %v1380 = vunpack.c.l.b16 %v612
    %v1381 = vunpack.c.l.b16 %v613
    %v1382 = vunpack.c.l.b16 %v614
    %v1383 = vunpack.c.l.b16 %v615
    %v1384 = vunpack.c.l.b16 %v616
    %v1385 = vunpack.c.l.b16 %v617
    %v1386 = vpack.c.b16 %v1003, %v1002
    %v1387 = vpack.c.b16 %v1005, %v1004
    %v1388 = vpack.c.b16 %v1007, %v1006
    %v1389 = vpack.c.b16 %v1009, %v1008
    %v1390 = vpack.c.b16 %v1011, %v1010
    %v1391 = vpack.c.b16 %v1013, %v1012
    %v1392 = vpack.c.b16 %v1015, %v1014
    %v1393 = vpack.c.b16 %v1017, %v1016
    %v1394 = vpack.c.b16 %v1019, %v1018
    %v1395 = vpack.c.b16 %v1021, %v1020
    %v1396 = vpack.c.b16 %v1023, %v1022
    %v1397 = vpack.c.b16 %v1025, %v1024
    %v1398 = vpack.c.b16 %v1027, %v1026
    %v1399 = vpack.c.b16 %v1029, %v1028
    %v1400 = vpack.c.b16 %v1031, %v1030
    %v1401 = vpack.c.b16 %v1033, %v1032
    %v1402 = vpack.c.b16 %v1035, %v1034
    %v1403 = vpack.c.b16 %v1037, %v1036
    %v1404 = vpack.c.b16 %v1039, %v1038
    %v1405 = vpack.c.b16 %v1041, %v1040
    %v1406 = vpack.c.b16 %v1043, %v1042
    %v1407 = vpack.c.b16 %v1045, %v1044
    %v1408 = vpack.c.b16 %v1047, %v1046
    %v1409 = vpack.c.b16 %v1049, %v1048
    %v1410 = vpack.c.b16 %v1051, %v1050
    %v1411 = vpack.c.b16 %v1053, %v1052
    %v1412 = vpack.c.b16 %v1055, %v1054
    %v1413 = vpack.c.b16 %v1057, %v1056
    %v1414 = vpack.c.b16 %v1059, %v1058
    %v1415 = vpack.c.b16 %v1061, %v1060
    %v1416 = vpack.c.b16 %v1063, %v1062
    %v1417 = vpack.c.b16 %v1065, %v1064
    %v1418 = vpack.c.b16 %v1067, %v1066
    %v1419 = vpack.c.b16 %v1069, %v1068
    %v1420 = vpack.c.b16 %v1071, %v1070
    %v1421 = vpack.c.b16 %v1073, %v1072
    %v1422 = vpack.c.b16 %v1075, %v1074
    %v1423 = vpack.c.b16 %v1077, %v1076
    %v1424 = vpack.c.b16 %v1079, %v1078
    %v1425 = vpack.c.b16 %v1081, %v1080
    %v1426 = vpack.c.b16 %v1083, %v1082
    %v1427 = vpack.c.b16 %v1085, %v1084
    %v1428 = vpack.c.b16 %v1087, %v1086
    %v1429 = vpack.c.b16 %v1089, %v1088
    %v1430 = vpack.c.b16 %v1091, %v1090
    %v1431 = vpack.c.b16 %v1093, %v1092
    %v1432 = vpack.c.b16 %v1095, %v1094
    %v1433 = vpack.c.b16 %v1097, %v1096
    %v1434 = vpack.c.b16 %v1099, %v1098
    %v1435 = vpack.c.b16 %v1101, %v1100
    %v1436 = vpack.c.b16 %v1103, %v1102
    %v1437 = vpack.c.b16 %v1105, %v1104
    %v1438 = vpack.c.b16 %v1107, %v1106
    %v1439 = vpack.c.b16 %v1109, %v1108
    %v1440 = vpack.c.b16 %v1111, %v1110
    %v1441 = vpack.c.b16 %v1113, %v1112
    %v1442 = vpack.c.b16 %v1115, %v1114
    %v1443 = vpack.c.b16 %v1117, %v1116
    %v1444 = vpack.c.b16 %v1119, %v1118
    %v1445 = vpack.c.b16 %v1121, %v1120
    %v1446 = vpack.c.b16 %v1123, %v1122
    %v1447 = vpack.c.b16 %v1125, %v1124
    %v1448 = vpack.c.b16 %v1127, %v1126
    %v1449 = vpack.c.b16 %v1129, %v1128
    %v1450 = vpack.c.b16 %v1131, %v1130
    %v1451 = vpack.c.b16 %v1133, %v1132
    %v1452 = vpack.c.b16 %v1135, %v1134
    %v1453 = vpack.c.b16 %v1137, %v1136
    %v1454 = vpack.c.b16 %v1139, %v1138
    %v1455 = vpack.c.b16 %v1141, %v1140
    %v1456 = vpack.c.b16 %v1143, %v1142
    %v1457 = vpack.c.b16 %v1145, %v1144
    %v1458 = vpack.c.b16 %v1147, %v1146
    %v1459 = vpack.c.b16 %v1149, %v1148
    %v1460 = vpack.c.b16 %v1151, %v1150
    %v1461 = vpack.c.b16 %v1153, %v1152
    %v1462 = vpack.c.b16 %v1155, %v1154
    %v1463 = vpack.c.b16 %v1157, %v1156
    %v1464 = vpack.c.b16 %v1159, %v1158
    %v1465 = vpack.c.b16 %v1161, %v1160
    %v1466 = vpack.c.b16 %v1163, %v1162
    %v1467 = vpack.c.b16 %v1165, %v1164
    %v1468 = vpack.c.b16 %v1167, %v1166
    %v1469 = vpack.c.b16 %v1169, %v1168
    %v1470 = vpack.c.b16 %v1171, %v1170
    %v1471 = vpack.c.b16 %v1173, %v1172
    %v1472 = vpack.c.b16 %v1175, %v1174
    %v1473 = vpack.c.b16 %v1177, %v1176
    %v1474 = vpack.c.b16 %v1179, %v1178
    %v1475 = vpack.c.b16 %v1181, %v1180
    %v1476 = vpack.c.b16 %v1183, %v1182
    %v1477 = vpack.c.b16 %v1185, %v1184
    %v1478 = vpack.c.b16 %v1187, %v1186
    %v1479 = vpack.c.b16 %v1189, %v1188
    %v1480 = vpack.c.b16 %v1191, %v1190
    %v1481 = vpack.c.b16 %v1193, %v1192
    %v1482 = vpack.c.b16 %v1195, %v1194
    %v1483 = vpack.c.b16 %v1197, %v1196
    %v1484 = vpack.c.b16 %v1199, %v1198
    %v1485 = vpack.c.b16 %v1201, %v1200
    %v1486 = vpack.c.b16 %v1203, %v1202
    %v1487 = vpack.c.b16 %v1205, %v1204
    %v1488 = vpack.c.b16 %v1207, %v1206
    %v1489 = vpack.c.b16 %v1209, %v1208
    %v1490 = vpack.c.b16 %v1211, %v1210
    %v1491 = vpack.c.b16 %v1213, %v1212
    %v1492 = vpack.c.b16 %v1215, %v1214
    %v1493 = vpack.c.b16 %v1217, %v1216
    %v1494 = vpack.c.b16 %v1219, %v1218
    %v1495 = vpack.c.b16 %v1221, %v1220
    %v1496 = vpack.c.b16 %v1223, %v1222
    %v1497 = vpack.c.b16 %v1225, %v1224
    %v1498 = vpack.c.b16 %v1227, %v1226
    %v1499 = vpack.c.b16 %v1229, %v1228
    %v1500 = vpack.c.b16 %v1231, %v1230
    %v1501 = vpack.c.b16 %v1233, %v1232
    %v1502 = vpack.c.b16 %v1235, %v1234
    %v1503 = vpack.c.b16 %v1237, %v1236
    %v1504 = vpack.c.b16 %v1239, %v1238
    %v1505 = vpack.c.b16 %v1241, %v1240
    %v1506 = vpack.c.b16 %v1243, %v1242
    %v1507 = vpack.c.b16 %v1245, %v1244
    %v1508 = vpack.c.b16 %v1247, %v1246
    %v1509 = vpack.c.b16 %v1249, %v1248
    %v1510 = vpack.c.b16 %v1251, %v1250
    %v1511 = vpack.c.b16 %v1253, %v1252
    %v1512 = vpack.c.b16 %v1255, %v1254
    %v1513 = vpack.c.b16 %v1257, %v1256
    %v1514 = vpack.c.b16 %v1259, %v1258
    %v1515 = vpack.c.b16 %v1261, %v1260
    %v1516 = vpack.c.b16 %v1263, %v1262
    %v1517 = vpack.c.b16 %v1265, %v1264
    %v1518 = vpack.c.b16 %v1267, %v1266
    %v1519 = vpack.c.b16 %v1269, %v1268
    %v1520 = vpack.c.b16 %v1271, %v1270
    %v1521 = vpack.c.b16 %v1273, %v1272
    %v1522 = vpack.c.b16 %v1275, %v1274
    %v1523 = vpack.c.b16 %v1277, %v1276
    %v1524 = vpack.c.b16 %v1279, %v1278
    %v1525 = vpack.c.b16 %v1281, %v1280
    %v1526 = vpack.c.b16 %v1283, %v1282
    %v1527 = vpack.c.b16 %v1285, %v1284
    %v1528 = vpack.c.b16 %v1287, %v1286
    %v1529 = vpack.c.b16 %v1289, %v1288
    %v1530 = vpack.c.b16 %v1291, %v1290
    %v1531 = vpack.c.b16 %v1293, %v1292
    %v1532 = vpack.c.b16 %v1295, %v1294
    %v1533 = vpack.c.b16 %v1297, %v1296
    %v1534 = vpack.c.b16 %v1299, %v1298
    %v1535 = vpack.c.b16 %v1301, %v1300
    %v1536 = vpack.c.b16 %v1303, %v1302
    %v1537 = vpack.c.b16 %v1305, %v1304
    %v1538 = vpack.c.b16 %v1307, %v1306
    %v1539 = vpack.c.b16 %v1309, %v1308
    %v1540 = vpack.c.b16 %v1311, %v1310
    %v1541 = vpack.c.b16 %v1313, %v1312
    %v1542 = vpack.c.b16 %v1315, %v1314
    %v1543 = vpack.c.b16 %v1317, %v1316
    %v1544 = vpack.c.b16 %v1319, %v1318
    %v1545 = vpack.c.b16 %v1321, %v1320
    %v1546 = vpack.c.b16 %v1323, %v1322
    %v1547 = vpack.c.b16 %v1325, %v1324
    %v1548 = vpack.c.b16 %v1327, %v1326
    %v1549 = vpack.c.b16 %v1329, %v1328
    %v1550 = vpack.c.b16 %v1331, %v1330
    %v1551 = vpack.c.b16 %v1333, %v1332
    %v1552 = vpack.c.b16 %v1335, %v1334
    %v1553 = vpack.c.b16 %v1337, %v1336
    %v1554 = vpack.c.b16 %v1339, %v1338
    %v1555 = vpack.c.b16 %v1341, %v1340
    %v1556 = vpack.c.b16 %v1343, %v1342
    %v1557 = vpack.c.b16 %v1345, %v1344
    %v1558 = vpack.c.b16 %v1347, %v1346
    %v1559 = vpack.c.b16 %v1349, %v1348
    %v1560 = vpack.c.b16 %v1351, %v1350
    %v1561 = vpack.c.b16 %v1353, %v1352
    %v1562 = vpack.c.b16 %v1355, %v1354
    %v1563 = vpack.c.b16 %v1357, %v1356
    %v1564 = vpack.c.b16 %v1359, %v1358
    %v1565 = vpack.c.b16 %v1361, %v1360
    %v1566 = vpack.c.b16 %v1363, %v1362
    %v1567 = vpack.c.b16 %v1365, %v1364
    %v1568 = vpack.c.b16 %v1367, %v1366
    %v1569 = vpack.c.b16 %v1369, %v1368
    %v1570 = vpack.c.b16 %v1371, %v1370
    %v1571 = vpack.c.b16 %v1373, %v1372
    %v1572 = vpack.c.b16 %v1375, %v1374
    %v1573 = vpack.c.b16 %v1377, %v1376
    %v1574 = vpack.c.b16 %v1379, %v1378
    %v1575 = vpack.c.b16 %v1381, %v1380
    %v1576 = vpack.c.b16 %v1383, %v1382
    %v1577 = vpack.c.b16 %v1385, %v1384
    %1770 = vmatprep.subr.bf16.mxu0 0
    %1771 = vmatpush1.bf16.msra.mxu0 %v1386
    %1772 = vmatprep.subr.bf16.mxu0 0
    %1773 = vmatpush1.bf16.msra.mxu0 %v1387
    %1774 = vmatprep.subr.bf16.mxu0 0
    %1775 = vmatpush1.bf16.msra.mxu0 %v1388
    %1776 = vmatprep.subr.bf16.mxu0 0
    %1777 = vmatpush1.bf16.msra.mxu0 %v1389
    %1778 = vmatprep.subr.bf16.mxu0 0
    %1779 = vmatpush1.bf16.msra.mxu0 %v1390
    %1780 = vmatprep.subr.bf16.mxu0 0
    %1781 = vmatpush1.bf16.msra.mxu0 %v1391
    %1782 = vmatprep.subr.bf16.mxu0 0
    %1783 = vmatpush1.bf16.msra.mxu0 %v1392
    %1784 = vmatprep.subr.bf16.mxu0 0
    %1785 = vmatpush1.bf16.msra.mxu0 %v1393
    %1786 = vmatprep.subr.bf16.mxu0 0
    %1787 = vmatpush1.bf16.msra.mxu0 %v1394
    %1788 = vmatprep.subr.bf16.mxu0 0
    %1789 = vmatpush1.bf16.msra.mxu0 %v1395
    %1790 = vmatprep.subr.bf16.mxu0 0
    %1791 = vmatpush1.bf16.msra.mxu0 %v1396
    %1792 = vmatprep.subr.bf16.mxu0 0
    %1793 = vmatpush1.bf16.msra.mxu0 %v1397
    %1794 = vmatprep.subr.bf16.mxu0 0
    %1795 = vmatpush1.bf16.msra.mxu0 %v1398
    %1796 = vmatprep.subr.bf16.mxu0 0
    %1797 = vmatpush1.bf16.msra.mxu0 %v1399
    %1798 = vmatprep.subr.bf16.mxu0 0
    %1799 = vmatpush1.bf16.msra.mxu0 %v1400
    %1800 = vmatprep.subr.bf16.mxu0 0
    %1801 = vmatpush1.bf16.msra.mxu0 %v1401
    %1802 = vmatprep.mubr.bf16.mxu0 %v211
    %1803 = vmatmul.mubr.bf16.gmra.mrb[0].mxu0 %v210
    %v1804 = vpop.f32.mrb[0].mxu0
    %v1805 = vadd.f32 0.0, %v1804
    %v1806 = vpop.f32.mrb[0].mxu0
    %v1807 = vpop.f32.mrb[0].mxu0
    %v1808 = vpop.f32.mrb[0].mxu0
    %1809 = vdwg.mxu0
    %1810 = vmatprep.subr.bf16.mxu0 0
    %1811 = vmatpush1.bf16.msra.mxu0 %v1402
    %1812 = vmatprep.subr.bf16.mxu0 0
    %1813 = vmatpush1.bf16.msra.mxu0 %v1403
    %1814 = vmatprep.subr.bf16.mxu0 0
    %1815 = vmatpush1.bf16.msra.mxu0 %v1404
    %1816 = vmatprep.subr.bf16.mxu0 0
    %1817 = vmatpush1.bf16.msra.mxu0 %v1405
    %1818 = vmatprep.subr.bf16.mxu0 0
    %1819 = vmatpush1.bf16.msra.mxu0 %v1406
    %1820 = vmatprep.subr.bf16.mxu0 0
    %1821 = vmatpush1.bf16.msra.mxu0 %v1407
    %1822 = vmatprep.subr.bf16.mxu0 0
    %1823 = vmatpush1.bf16.msra.mxu0 %v1408
    %1824 = vmatprep.subr.bf16.mxu0 0
    %1825 = vmatpush1.bf16.msra.mxu0 %v1409
    %1826 = vmatprep.subr.bf16.mxu0 0
    %1827 = vmatpush1.bf16.msra.mxu0 %v1410
    %1828 = vmatprep.subr.bf16.mxu0 0
    %1829 = vmatpush1.bf16.msra.mxu0 %v1411
    %1830 = vmatprep.subr.bf16.mxu0 0
    %1831 = vmatpush1.bf16.msra.mxu0 %v1412
    %1832 = vmatprep.subr.bf16.mxu0 0
    %1833 = vmatpush1.bf16.msra.mxu0 %v1413
    %1834 = vmatprep.subr.bf16.mxu0 0
    %1835 = vmatpush1.bf16.msra.mxu0 %v1414
    %1836 = vmatprep.subr.bf16.mxu0 0
    %1837 = vmatpush1.bf16.msra.mxu0 %v1415
    %1838 = vmatprep.subr.bf16.mxu0 0
    %1839 = vmatpush1.bf16.msra.mxu0 %v1416
    %1840 = vmatprep.subr.bf16.mxu0 0
    %1841 = vmatpush1.bf16.msra.mxu0 %v1417
    %1842 = vmatprep.mubr.bf16.mxu0 %v213
    %1843 = vmatmul.mubr.bf16.gmra.mrb[0].mxu0 %v212
    %v1844 = vpop.f32.mrb[0].mxu0
    %v1845 = vadd.f32 %v1805, %v1844
    %v1846 = vpop.f32.mrb[0].mxu0
    %v1847 = vpop.f32.mrb[0].mxu0
    %v1848 = vpop.f32.mrb[0].mxu0
    %1849 = vdwg.mxu0
    %1850 = vmatprep.subr.bf16.mxu0 0
    %1851 = vmatpush1.bf16.msra.mxu0 %v1418
    %1852 = vmatprep.subr.bf16.mxu0 0
    %1853 = vmatpush1.bf16.msra.mxu0 %v1419
    %1854 = vmatprep.subr.bf16.mxu0 0
    %1855 = vmatpush1.bf16.msra.mxu0 %v1420
    %1856 = vmatprep.subr.bf16.mxu0 0
    %1857 = vmatpush1.bf16.msra.mxu0 %v1421
    %1858 = vmatprep.subr.bf16.mxu0 0
    %1859 = vmatpush1.bf16.msra.mxu0 %v1422
    %1860 = vmatprep.subr.bf16.mxu0 0
    %1861 = vmatpush1.bf16.msra.mxu0 %v1423
    %1862 = vmatprep.subr.bf16.mxu0 0
    %1863 = vmatpush1.bf16.msra.mxu0 %v1424
    %1864 = vmatprep.subr.bf16.mxu0 0
    %1865 = vmatpush1.bf16.msra.mxu0 %v1425
    %1866 = vmatprep.subr.bf16.mxu0 0
    %1867 = vmatpush1.bf16.msra.mxu0 %v1426
    %1868 = vmatprep.subr.bf16.mxu0 0
    %1869 = vmatpush1.bf16.msra.mxu0 %v1427
    %1870 = vmatprep.subr.bf16.mxu0 0
    %1871 = vmatpush1.bf16.msra.mxu0 %v1428
    %1872 = vmatprep.subr.bf16.mxu0 0
    %1873 = vmatpush1.bf16.msra.mxu0 %v1429
    %1874 = vmatprep.subr.bf16.mxu0 0
    %1875 = vmatpush1.bf16.msra.mxu0 %v1430
    %1876 = vmatprep.subr.bf16.mxu0 0
    %1877 = vmatpush1.bf16.msra.mxu0 %v1431
    %1878 = vmatprep.subr.bf16.mxu0 0
    %1879 = vmatpush1.bf16.msra.mxu0 %v1432
    %1880 = vmatprep.subr.bf16.mxu0 0
    %1881 = vmatpush1.bf16.msra.mxu0 %v1433
    %1882 = vmatprep.mubr.bf16.mxu0 %v215
    %1883 = vmatmul.mubr.bf16.gmra.mrb[0].mxu0 %v214
    %v1884 = vpop.f32.mrb[0].mxu0
    %v1885 = vadd.f32 %v1845, %v1884
    %v1886 = vpop.f32.mrb[0].mxu0
    %v1887 = vpop.f32.mrb[0].mxu0
    %v1888 = vpop.f32.mrb[0].mxu0
    %1889 = vdwg.mxu0
    %1890 = vmatprep.subr.bf16.mxu0 0
    %1891 = vmatpush1.bf16.msra.mxu0 %v1434
    %1892 = vmatprep.subr.bf16.mxu0 0
    %1893 = vmatpush1.bf16.msra.mxu0 %v1435
    %1894 = vmatprep.subr.bf16.mxu0 0
    %1895 = vmatpush1.bf16.msra.mxu0 %v1436
    %1896 = vmatprep.subr.bf16.mxu0 0
    %1897 = vmatpush1.bf16.msra.mxu0 %v1437
    %1898 = vmatprep.subr.bf16.mxu0 0
    %1899 = vmatpush1.bf16.msra.mxu0 %v1438
    %1900 = vmatprep.subr.bf16.mxu0 0
    %1901 = vmatpush1.bf16.msra.mxu0 %v1439
    %1902 = vmatprep.subr.bf16.mxu0 0
    %1903 = vmatpush1.bf16.msra.mxu0 %v1440
    %1904 = vmatprep.subr.bf16.mxu0 0
    %1905 = vmatpush1.bf16.msra.mxu0 %v1441
    %1906 = vmatprep.subr.bf16.mxu0 0
    %1907 = vmatpush1.bf16.msra.mxu0 %v1442
    %1908 = vmatprep.subr.bf16.mxu0 0
    %1909 = vmatpush1.bf16.msra.mxu0 %v1443
    %1910 = vmatprep.subr.bf16.mxu0 0
    %1911 = vmatpush1.bf16.msra.mxu0 %v1444
    %1912 = vmatprep.subr.bf16.mxu0 0
    %1913 = vmatpush1.bf16.msra.mxu0 %v1445
    %1914 = vmatprep.subr.bf16.mxu0 0
    %1915 = vmatpush1.bf16.msra.mxu0 %v1446
    %1916 = vmatprep.subr.bf16.mxu0 0
    %1917 = vmatpush1.bf16.msra.mxu0 %v1447
    %1918 = vmatprep.subr.bf16.mxu0 0
    %1919 = vmatpush1.bf16.msra.mxu0 %v1448
    %1920 = vmatprep.subr.bf16.mxu0 0
    %1921 = vmatpush1.bf16.msra.mxu0 %v1449
    %1922 = vmatprep.mubr.bf16.mxu0 %v217
    %1923 = vmatmul.mubr.bf16.gmra.mrb[0].mxu0 %v216
    %v1924 = vpop.f32.mrb[0].mxu0
    %v1925 = vadd.f32 %v1885, %v1924
    %v1926 = vpop.f32.mrb[0].mxu0
    %v1927 = vpop.f32.mrb[0].mxu0
    %v1928 = vpop.f32.mrb[0].mxu0
    %1929 = vdwg.mxu0
    %1930 = vmatprep.subr.bf16.mxu0 0
    %1931 = vmatpush1.bf16.msra.mxu0 %v1450
    %1932 = vmatprep.subr.bf16.mxu0 0
    %1933 = vmatpush1.bf16.msra.mxu0 %v1451
    %1934 = vmatprep.subr.bf16.mxu0 0
    %1935 = vmatpush1.bf16.msra.mxu0 %v1452
    %1936 = vmatprep.subr.bf16.mxu0 0
    %1937 = vmatpush1.bf16.msra.mxu0 %v1453
    %1938 = vmatprep.subr.bf16.mxu0 0
    %1939 = vmatpush1.bf16.msra.mxu0 %v1454
    %1940 = vmatprep.subr.bf16.mxu0 0
    %1941 = vmatpush1.bf16.msra.mxu0 %v1455
    %1942 = vmatprep.subr.bf16.mxu0 0
    %1943 = vmatpush1.bf16.msra.mxu0 %v1456
    %1944 = vmatprep.subr.bf16.mxu0 0
    %1945 = vmatpush1.bf16.msra.mxu0 %v1457
    %1946 = vmatprep.subr.bf16.mxu0 0
    %1947 = vmatpush1.bf16.msra.mxu0 %v1458
    %1948 = vmatprep.subr.bf16.mxu0 0
    %1949 = vmatpush1.bf16.msra.mxu0 %v1459
    %1950 = vmatprep.subr.bf16.mxu0 0
    %1951 = vmatpush1.bf16.msra.mxu0 %v1460
    %1952 = vmatprep.subr.bf16.mxu0 0
    %1953 = vmatpush1.bf16.msra.mxu0 %v1461
    %1954 = vmatprep.subr.bf16.mxu0 0
    %1955 = vmatpush1.bf16.msra.mxu0 %v1462
    %1956 = vmatprep.subr.bf16.mxu0 0
    %1957 = vmatpush1.bf16.msra.mxu0 %v1463
    %1958 = vmatprep.subr.bf16.mxu0 0
    %1959 = vmatpush1.bf16.msra.mxu0 %v1464
    %1960 = vmatprep.subr.bf16.mxu0 0
    %1961 = vmatpush1.bf16.msra.mxu0 %v1465
    %1962 = vmatprep.mubr.bf16.mxu0 %v219
    %1963 = vmatmul.mubr.bf16.gmra.mrb[0].mxu0 %v218
    %v1964 = vpop.f32.mrb[0].mxu0
    %v1965 = vadd.f32 %v1925, %v1964
    %v1966 = vpop.f32.mrb[0].mxu0
    %v1967 = vpop.f32.mrb[0].mxu0
    %v1968 = vpop.f32.mrb[0].mxu0
    %1969 = vdwg.mxu0
    %1970 = vmatprep.subr.bf16.mxu0 0
    %1971 = vmatpush1.bf16.msra.mxu0 %v1466
    %1972 = vmatprep.subr.bf16.mxu0 0
    %1973 = vmatpush1.bf16.msra.mxu0 %v1467
    %1974 = vmatprep.subr.bf16.mxu0 0
    %1975 = vmatpush1.bf16.msra.mxu0 %v1468
    %1976 = vmatprep.subr.bf16.mxu0 0
    %1977 = vmatpush1.bf16.msra.mxu0 %v1469
    %1978 = vmatprep.subr.bf16.mxu0 0
    %1979 = vmatpush1.bf16.msra.mxu0 %v1470
    %1980 = vmatprep.subr.bf16.mxu0 0
    %1981 = vmatpush1.bf16.msra.mxu0 %v1471
    %1982 = vmatprep.subr.bf16.mxu0 0
    %1983 = vmatpush1.bf16.msra.mxu0 %v1472
    %1984 = vmatprep.subr.bf16.mxu0 0
    %1985 = vmatpush1.bf16.msra.mxu0 %v1473
    %1986 = vmatprep.subr.bf16.mxu0 0
    %1987 = vmatpush1.bf16.msra.mxu0 %v1474
    %1988 = vmatprep.subr.bf16.mxu0 0
    %1989 = vmatpush1.bf16.msra.mxu0 %v1475
    %1990 = vmatprep.subr.bf16.mxu0 0
    %1991 = vmatpush1.bf16.msra.mxu0 %v1476
    %1992 = vmatprep.subr.bf16.mxu0 0
    %1993 = vmatpush1.bf16.msra.mxu0 %v1477
    %1994 = vmatprep.subr.bf16.mxu0 0
    %1995 = vmatpush1.bf16.msra.mxu0 %v1478
    %1996 = vmatprep.subr.bf16.mxu0 0
    %1997 = vmatpush1.bf16.msra.mxu0 %v1479
    %1998 = vmatprep.subr.bf16.mxu0 0
    %1999 = vmatpush1.bf16.msra.mxu0 %v1480
    %2000 = vmatprep.subr.bf16.mxu0 0
    %2001 = vmatpush1.bf16.msra.mxu0 %v1481
    %2002 = vmatprep.mubr.bf16.mxu0 %v221
    %2003 = vmatmul.mubr.bf16.gmra.mrb[0].mxu0 %v220
    %v2004 = vpop.f32.mrb[0].mxu0
    %v2005 = vadd.f32 %v1965, %v2004
    %v2006 = vpop.f32.mrb[0].mxu0
    %v2007 = vpop.f32.mrb[0].mxu0
    %v2008 = vpop.f32.mrb[0].mxu0
    %2009 = vdwg.mxu0
    %2010 = vmatprep.subr.bf16.mxu0 0
    %2011 = vmatpush1.bf16.msra.mxu0 %v1482
    %2012 = vmatprep.subr.bf16.mxu0 0
    %2013 = vmatpush1.bf16.msra.mxu0 %v1483
    %2014 = vmatprep.subr.bf16.mxu0 0
    %2015 = vmatpush1.bf16.msra.mxu0 %v1484
    %2016 = vmatprep.subr.bf16.mxu0 0
    %2017 = vmatpush1.bf16.msra.mxu0 %v1485
    %2018 = vmatprep.subr.bf16.mxu0 0
    %2019 = vmatpush1.bf16.msra.mxu0 %v1486
    %2020 = vmatprep.subr.bf16.mxu0 0
    %2021 = vmatpush1.bf16.msra.mxu0 %v1487
    %2022 = vmatprep.subr.bf16.mxu0 0
    %2023 = vmatpush1.bf16.msra.mxu0 %v1488
    %2024 = vmatprep.subr.bf16.mxu0 0
    %2025 = vmatpush1.bf16.msra.mxu0 %v1489
    %2026 = vmatprep.subr.bf16.mxu0 0
    %2027 = vmatpush1.bf16.msra.mxu0 %v1490
    %2028 = vmatprep.subr.bf16.mxu0 0
    %2029 = vmatpush1.bf16.msra.mxu0 %v1491
    %2030 = vmatprep.subr.bf16.mxu0 0
    %2031 = vmatpush1.bf16.msra.mxu0 %v1492
    %2032 = vmatprep.subr.bf16.mxu0 0
    %2033 = vmatpush1.bf16.msra.mxu0 %v1493
    %2034 = vmatprep.subr.bf16.mxu0 0
    %2035 = vmatpush1.bf16.msra.mxu0 %v1494
    %2036 = vmatprep.subr.bf16.mxu0 0
    %2037 = vmatpush1.bf16.msra.mxu0 %v1495
    %2038 = vmatprep.subr.bf16.mxu0 0
    %2039 = vmatpush1.bf16.msra.mxu0 %v1496
    %2040 = vmatprep.subr.bf16.mxu0 0
    %2041 = vmatpush1.bf16.msra.mxu0 %v1497
    %2042 = vmatprep.mubr.bf16.mxu0 %v223
    %2043 = vmatmul.mubr.bf16.gmra.mrb[0].mxu0 %v222
    %v2044 = vpop.f32.mrb[0].mxu0
    %v2045 = vadd.f32 %v2005, %v2044
    %v2046 = vpop.f32.mrb[0].mxu0
    %v2047 = vpop.f32.mrb[0].mxu0
    %v2048 = vpop.f32.mrb[0].mxu0
    %2049 = vdwg.mxu0
    %2050 = vmatprep.subr.bf16.mxu0 0
    %2051 = vmatpush1.bf16.msra.mxu0 %v1498
    %2052 = vmatprep.subr.bf16.mxu0 0
    %2053 = vmatpush1.bf16.msra.mxu0 %v1499
    %2054 = vmatprep.subr.bf16.mxu0 0
    %2055 = vmatpush1.bf16.msra.mxu0 %v1500
    %2056 = vmatprep.subr.bf16.mxu0 0
    %2057 = vmatpush1.bf16.msra.mxu0 %v1501
    %2058 = vmatprep.subr.bf16.mxu0 0
    %2059 = vmatpush1.bf16.msra.mxu0 %v1502
    %2060 = vmatprep.subr.bf16.mxu0 0
    %2061 = vmatpush1.bf16.msra.mxu0 %v1503
    %2062 = vmatprep.subr.bf16.mxu0 0
    %2063 = vmatpush1.bf16.msra.mxu0 %v1504
    %2064 = vmatprep.subr.bf16.mxu0 0
    %2065 = vmatpush1.bf16.msra.mxu0 %v1505
    %2066 = vmatprep.subr.bf16.mxu0 0
    %2067 = vmatpush1.bf16.msra.mxu0 %v1506
    %2068 = vmatprep.subr.bf16.mxu0 0
    %2069 = vmatpush1.bf16.msra.mxu0 %v1507
    %2070 = vmatprep.subr.bf16.mxu0 0
    %2071 = vmatpush1.bf16.msra.mxu0 %v1508
    %2072 = vmatprep.subr.bf16.mxu0 0
    %2073 = vmatpush1.bf16.msra.mxu0 %v1509
    %2074 = vmatprep.subr.bf16.mxu0 0
    %2075 = vmatpush1.bf16.msra.mxu0 %v1510
    %2076 = vmatprep.subr.bf16.mxu0 0
    %2077 = vmatpush1.bf16.msra.mxu0 %v1511
    %2078 = vmatprep.subr.bf16.mxu0 0
    %2079 = vmatpush1.bf16.msra.mxu0 %v1512
    %2080 = vmatprep.subr.bf16.mxu0 0
    %2081 = vmatpush1.bf16.msra.mxu0 %v1513
    %2082 = vmatprep.mubr.bf16.mxu0 %v225
    %2083 = vmatmul.mubr.bf16.gmra.mrb[0].mxu0 %v224
    %v2084 = vpop.f32.mrb[0].mxu0
    %v2085 = vadd.f32 %v2045, %v2084
    %v2086 = vpop.f32.mrb[0].mxu0
    %v2087 = vpop.f32.mrb[0].mxu0
    %v2088 = vpop.f32.mrb[0].mxu0
    %2089 = vdwg.mxu0
    %2090 = vmatprep.subr.bf16.mxu0 0
    %2091 = vmatpush1.bf16.msra.mxu0 %v1514
    %2092 = vmatprep.subr.bf16.mxu0 0
    %2093 = vmatpush1.bf16.msra.mxu0 %v1515
    %2094 = vmatprep.subr.bf16.mxu0 0
    %2095 = vmatpush1.bf16.msra.mxu0 %v1516
    %2096 = vmatprep.subr.bf16.mxu0 0
    %2097 = vmatpush1.bf16.msra.mxu0 %v1517
    %2098 = vmatprep.subr.bf16.mxu0 0
    %2099 = vmatpush1.bf16.msra.mxu0 %v1518
    %2100 = vmatprep.subr.bf16.mxu0 0
    %2101 = vmatpush1.bf16.msra.mxu0 %v1519
    %2102 = vmatprep.subr.bf16.mxu0 0
    %2103 = vmatpush1.bf16.msra.mxu0 %v1520
    %2104 = vmatprep.subr.bf16.mxu0 0
    %2105 = vmatpush1.bf16.msra.mxu0 %v1521
    %2106 = vmatprep.subr.bf16.mxu0 0
    %2107 = vmatpush1.bf16.msra.mxu0 %v1522
    %2108 = vmatprep.subr.bf16.mxu0 0
    %2109 = vmatpush1.bf16.msra.mxu0 %v1523
    %2110 = vmatprep.subr.bf16.mxu0 0
    %2111 = vmatpush1.bf16.msra.mxu0 %v1524
    %2112 = vmatprep.subr.bf16.mxu0 0
    %2113 = vmatpush1.bf16.msra.mxu0 %v1525
    %2114 = vmatprep.subr.bf16.mxu0 0
    %2115 = vmatpush1.bf16.msra.mxu0 %v1526
    %2116 = vmatprep.subr.bf16.mxu0 0
    %2117 = vmatpush1.bf16.msra.mxu0 %v1527
    %2118 = vmatprep.subr.bf16.mxu0 0
    %2119 = vmatpush1.bf16.msra.mxu0 %v1528
    %2120 = vmatprep.subr.bf16.mxu0 0
    %2121 = vmatpush1.bf16.msra.mxu0 %v1529
    %2122 = vmatprep.mubr.bf16.mxu0 %v227
    %2123 = vmatmul.mubr.bf16.gmra.mrb[0].mxu0 %v226
    %v2124 = vpop.f32.mrb[0].mxu0
    %v2125 = vadd.f32 %v2085, %v2124
    %v2126 = vpop.f32.mrb[0].mxu0
    %v2127 = vpop.f32.mrb[0].mxu0
    %v2128 = vpop.f32.mrb[0].mxu0
    %2129 = vdwg.mxu0
    %2130 = vmatprep.subr.bf16.mxu0 0
    %2131 = vmatpush1.bf16.msra.mxu0 %v1530
    %2132 = vmatprep.subr.bf16.mxu0 0
    %2133 = vmatpush1.bf16.msra.mxu0 %v1531
    %2134 = vmatprep.subr.bf16.mxu0 0
    %2135 = vmatpush1.bf16.msra.mxu0 %v1532
    %2136 = vmatprep.subr.bf16.mxu0 0
    %2137 = vmatpush1.bf16.msra.mxu0 %v1533
    %2138 = vmatprep.subr.bf16.mxu0 0
    %2139 = vmatpush1.bf16.msra.mxu0 %v1534
    %2140 = vmatprep.subr.bf16.mxu0 0
    %2141 = vmatpush1.bf16.msra.mxu0 %v1535
    %2142 = vmatprep.subr.bf16.mxu0 0
    %2143 = vmatpush1.bf16.msra.mxu0 %v1536
    %2144 = vmatprep.subr.bf16.mxu0 0
    %2145 = vmatpush1.bf16.msra.mxu0 %v1537
    %2146 = vmatprep.subr.bf16.mxu0 0
    %2147 = vmatpush1.bf16.msra.mxu0 %v1538
    %2148 = vmatprep.subr.bf16.mxu0 0
    %2149 = vmatpush1.bf16.msra.mxu0 %v1539
    %2150 = vmatprep.subr.bf16.mxu0 0
    %2151 = vmatpush1.bf16.msra.mxu0 %v1540
    %2152 = vmatprep.subr.bf16.mxu0 0
    %2153 = vmatpush1.bf16.msra.mxu0 %v1541
    %2154 = vmatprep.subr.bf16.mxu0 0
    %2155 = vmatpush1.bf16.msra.mxu0 %v1542
    %2156 = vmatprep.subr.bf16.mxu0 0
    %2157 = vmatpush1.bf16.msra.mxu0 %v1543
    %2158 = vmatprep.subr.bf16.mxu0 0
    %2159 = vmatpush1.bf16.msra.mxu0 %v1544
    %2160 = vmatprep.subr.bf16.mxu0 0
    %2161 = vmatpush1.bf16.msra.mxu0 %v1545
    %2162 = vmatprep.mubr.bf16.mxu0 %v229
    %2163 = vmatmul.mubr.bf16.gmra.mrb[0].mxu0 %v228
    %v2164 = vpop.f32.mrb[0].mxu0
    %v2165 = vadd.f32 %v2125, %v2164
    %v2166 = vpop.f32.mrb[0].mxu0
    %v2167 = vpop.f32.mrb[0].mxu0
    %v2168 = vpop.f32.mrb[0].mxu0
    %2169 = vdwg.mxu0
    %2170 = vmatprep.subr.bf16.mxu0 0
    %2171 = vmatpush1.bf16.msra.mxu0 %v1546
    %2172 = vmatprep.subr.bf16.mxu0 0
    %2173 = vmatpush1.bf16.msra.mxu0 %v1547
    %2174 = vmatprep.subr.bf16.mxu0 0
    %2175 = vmatpush1.bf16.msra.mxu0 %v1548
    %2176 = vmatprep.subr.bf16.mxu0 0
    %2177 = vmatpush1.bf16.msra.mxu0 %v1549
    %2178 = vmatprep.subr.bf16.mxu0 0
    %2179 = vmatpush1.bf16.msra.mxu0 %v1550
    %2180 = vmatprep.subr.bf16.mxu0 0
    %2181 = vmatpush1.bf16.msra.mxu0 %v1551
    %2182 = vmatprep.subr.bf16.mxu0 0
    %2183 = vmatpush1.bf16.msra.mxu0 %v1552
    %2184 = vmatprep.subr.bf16.mxu0 0
    %2185 = vmatpush1.bf16.msra.mxu0 %v1553
    %2186 = vmatprep.subr.bf16.mxu0 0
    %2187 = vmatpush1.bf16.msra.mxu0 %v1554
    %2188 = vmatprep.subr.bf16.mxu0 0
    %2189 = vmatpush1.bf16.msra.mxu0 %v1555
    %2190 = vmatprep.subr.bf16.mxu0 0
    %2191 = vmatpush1.bf16.msra.mxu0 %v1556
    %2192 = vmatprep.subr.bf16.mxu0 0
    %2193 = vmatpush1.bf16.msra.mxu0 %v1557
    %2194 = vmatprep.subr.bf16.mxu0 0
    %2195 = vmatpush1.bf16.msra.mxu0 %v1558
    %2196 = vmatprep.subr.bf16.mxu0 0
    %2197 = vmatpush1.bf16.msra.mxu0 %v1559
    %2198 = vmatprep.subr.bf16.mxu0 0
    %2199 = vmatpush1.bf16.msra.mxu0 %v1560
    %2200 = vmatprep.subr.bf16.mxu0 0
    %2201 = vmatpush1.bf16.msra.mxu0 %v1561
    %2202 = vmatprep.mubr.bf16.mxu0 %v231
    %2203 = vmatmul.mubr.bf16.gmra.mrb[0].mxu0 %v230
    %v2204 = vpop.f32.mrb[0].mxu0
    %v2205 = vadd.f32 %v2165, %v2204
    %v2206 = vpop.f32.mrb[0].mxu0
    %v2207 = vpop.f32.mrb[0].mxu0
    %v2208 = vpop.f32.mrb[0].mxu0
    %2209 = vdwg.mxu0
    %2210 = vmatprep.subr.bf16.mxu0 0
    %2211 = vmatpush1.bf16.msra.mxu0 %v1562
    %2212 = vmatprep.subr.bf16.mxu0 0
    %2213 = vmatpush1.bf16.msra.mxu0 %v1563
    %2214 = vmatprep.subr.bf16.mxu0 0
    %2215 = vmatpush1.bf16.msra.mxu0 %v1564
    %2216 = vmatprep.subr.bf16.mxu0 0
    %2217 = vmatpush1.bf16.msra.mxu0 %v1565
    %2218 = vmatprep.subr.bf16.mxu0 0
    %2219 = vmatpush1.bf16.msra.mxu0 %v1566
    %2220 = vmatprep.subr.bf16.mxu0 0
    %2221 = vmatpush1.bf16.msra.mxu0 %v1567
    %2222 = vmatprep.subr.bf16.mxu0 0
    %2223 = vmatpush1.bf16.msra.mxu0 %v1568
    %2224 = vmatprep.subr.bf16.mxu0 0
    %2225 = vmatpush1.bf16.msra.mxu0 %v1569
    %2226 = vmatprep.subr.bf16.mxu0 0
    %2227 = vmatpush1.bf16.msra.mxu0 %v1570
    %2228 = vmatprep.subr.bf16.mxu0 0
    %2229 = vmatpush1.bf16.msra.mxu0 %v1571
    %2230 = vmatprep.subr.bf16.mxu0 0
    %2231 = vmatpush1.bf16.msra.mxu0 %v1572
    %2232 = vmatprep.subr.bf16.mxu0 0
    %2233 = vmatpush1.bf16.msra.mxu0 %v1573
    %2234 = vmatprep.subr.bf16.mxu0 0
    %2235 = vmatpush1.bf16.msra.mxu0 %v1574
    %2236 = vmatprep.subr.bf16.mxu0 0
    %2237 = vmatpush1.bf16.msra.mxu0 %v1575
    %2238 = vmatprep.subr.bf16.mxu0 0
    %2239 = vmatpush1.bf16.msra.mxu0 %v1576
    %2240 = vmatprep.subr.bf16.mxu0 0
    %2241 = vmatpush1.bf16.msra.mxu0 %v1577
    %2242 = vmatprep.mubr.bf16.mxu0 %v233
    %2243 = vmatmul.mubr.bf16.gmra.mrb[0].mxu0 %v232
    %v2244 = vpop.f32.mrb[0].mxu0
    %v2245 = vadd.f32 %v2205, %v2244
    %v2246 = vpop.f32.mrb[0].mxu0
    %v2247 = vpop.f32.mrb[0].mxu0
    %v2248 = vpop.f32.mrb[0].mxu0
    %2249 = vdwg.mxu0
    %v2250 = vmax.f32 %v2245, 0.0
    %v2251 = vpack.c.bf16 %v2250, %v2250
    %v2252 = vld [vmem:[#allocation7] sm:$0xf]
    %v2253 = vld [vmem:[#allocation7 + $0x4] sm:$0xf]
    %v2254 = vld [vmem:[#allocation7 + $0x8] sm:$0xf]
    %v2255 = vld [vmem:[#allocation7 + $0xc] sm:$0xf]
    %v2256 = vld [vmem:[#allocation7 + $0x10] sm:$0xf]
    %v2257 = vld [vmem:[#allocation7 + $0x14] sm:$0xf]
    %v2258 = vld [vmem:[#allocation7 + $0x18] sm:$0xf]
    %v2259 = vld [vmem:[#allocation7 + $0x1c] sm:$0xf]
    %v2260 = vld [vmem:[#allocation7 + $0x20] sm:$0xf]
    %v2261 = vld [vmem:[#allocation7 + $0x24] sm:$0xf]
    %v2262 = vld [vmem:[#allocation7 + $0x28] sm:$0xf]
    %v2263 = vld [vmem:[#allocation7 + $0x2c] sm:$0xf]
    %v2264 = vld [vmem:[#allocation7 + $0x30] sm:$0xf]
    %v2265 = vld [vmem:[#allocation7 + $0x34] sm:$0xf]
    %v2266 = vld [vmem:[#allocation7 + $0x38] sm:$0xf]
    %v2267 = vld [vmem:[#allocation7 + $0x3c] sm:$0xf]
    %v2284 = vunpack.c.l.b16 %v2252
    %v2285 = vunpack.c.l.b16 %v2253
    %v2286 = vunpack.c.l.b16 %v2254
    %v2287 = vunpack.c.l.b16 %v2255
    %v2288 = vunpack.c.l.b16 %v2256
    %v2289 = vunpack.c.l.b16 %v2257
    %v2290 = vunpack.c.l.b16 %v2258
    %v2291 = vunpack.c.l.b16 %v2259
    %v2292 = vunpack.c.l.b16 %v2260
    %v2293 = vunpack.c.l.b16 %v2261
    %v2294 = vunpack.c.l.b16 %v2262
    %v2295 = vunpack.c.l.b16 %v2263
    %v2296 = vunpack.c.l.b16 %v2264
    %v2297 = vunpack.c.l.b16 %v2265
    %v2298 = vunpack.c.l.b16 %v2266
    %v2299 = vunpack.c.l.b16 %v2267
    %v2300 = vpack.c.b16 %v2285, %v2284
    %v2301 = vpack.c.b16 %v2287, %v2286
    %v2302 = vpack.c.b16 %v2289, %v2288
    %v2303 = vpack.c.b16 %v2291, %v2290
    %v2304 = vpack.c.b16 %v2293, %v2292
    %v2305 = vpack.c.b16 %v2295, %v2294
    %v2306 = vpack.c.b16 %v2297, %v2296
    %v2307 = vpack.c.b16 %v2299, %v2298
    %2316 = vmatprep.subr.bf16.mxu0 0
    %2317 = vmatpush1.bf16.msra.mxu0 %v2300
    %2318 = vmatprep.subr.bf16.mxu0 0
    %2319 = vmatpush1.bf16.msra.mxu0 %v2301
    %2320 = vmatprep.subr.bf16.mxu0 0
    %2321 = vmatpush1.bf16.msra.mxu0 %v2302
    %2322 = vmatprep.subr.bf16.mxu0 0
    %2323 = vmatpush1.bf16.msra.mxu0 %v2303
    %2324 = vmatprep.subr.bf16.mxu0 0
    %2325 = vmatpush1.bf16.msra.mxu0 %v2304
    %2326 = vmatprep.subr.bf16.mxu0 0
    %2327 = vmatpush1.bf16.msra.mxu0 %v2305
    %2328 = vmatprep.subr.bf16.mxu0 0
    %2329 = vmatpush1.bf16.msra.mxu0 %v2306
    %2330 = vmatprep.subr.bf16.mxu0 0
    %2331 = vmatpush1.bf16.msra.mxu0 %v2307
    %2332 = vmatprep.subr.bf16.mxu0 0
    %2333 = vmatpush1.bf16.msra.mxu0 0
    %2334 = vmatprep.subr.bf16.mxu0 0
    %2335 = vmatpush1.bf16.msra.mxu0 0
    %2336 = vmatprep.subr.bf16.mxu0 0
    %2337 = vmatpush1.bf16.msra.mxu0 0
    %2338 = vmatprep.subr.bf16.mxu0 0
    %2339 = vmatpush1.bf16.msra.mxu0 0
    %2340 = vmatprep.subr.bf16.mxu0 0
    %2341 = vmatpush1.bf16.msra.mxu0 0
    %2342 = vmatprep.subr.bf16.mxu0 0
    %2343 = vmatpush1.bf16.msra.mxu0 0
    %2344 = vmatprep.subr.bf16.mxu0 0
    %2345 = vmatpush1.bf16.msra.mxu0 0
    %2346 = vmatprep.subr.bf16.mxu0 0
    %2347 = vmatpush1.bf16.msra.mxu0 0
    %2348 = vmatprep.mubr.bf16.mxu0 0
    %2349 = vmatmul.mubr.bf16.gmra.mrb[0].mxu0 %v2251
    %v2350 = vpop.f32.mrb[0].mxu0
    %v2351 = vadd.f32 0.0, %v2350
    %v2352 = vpop.f32.mrb[0].mxu0
    %v2353 = vpop.f32.mrb[0].mxu0
    %v2354 = vpop.f32.mrb[0].mxu0
    %2355 = vdwg.mxu0
    %v2356 = vmax.f32 %v2351, 0.0
    %v2357 = vpack.c.bf16 %v2356, %v2356
    %v2358 = vld [vmem:[#allocation8] sm:$0xf]
    %v2359 = vld [vmem:[#allocation8 + $0x4] sm:$0xf]
    %v2360 = vld [vmem:[#allocation8 + $0x8] sm:$0xf]
    %v2361 = vld [vmem:[#allocation8 + $0xc] sm:$0xf]
    %v2362 = vld [vmem:[#allocation8 + $0x10] sm:$0xf]
    %v2363 = vld [vmem:[#allocation8 + $0x14] sm:$0xf]
    %v2364 = vld [vmem:[#allocation8 + $0x18] sm:$0xf]
    %v2365 = vld [vmem:[#allocation8 + $0x1c] sm:$0xf]
    %v2366 = vld [vmem:[#allocation8 + $0x20] sm:$0xf]
    %v2367 = vld [vmem:[#allocation8 + $0x24] sm:$0xf]
    %v2368 = vld [vmem:[#allocation8 + $0x28] sm:$0xf]
    %v2369 = vld [vmem:[#allocation8 + $0x2c] sm:$0xf]
    %v2370 = vld [vmem:[#allocation8 + $0x30] sm:$0xf]
    %v2371 = vld [vmem:[#allocation8 + $0x34] sm:$0xf]
    %v2372 = vld [vmem:[#allocation8 + $0x38] sm:$0xf]
    %v2373 = vld [vmem:[#allocation8 + $0x3c] sm:$0xf]
    %v2390 = vunpack.c.l.b16 %v2358
    %v2391 = vunpack.c.l.b16 %v2359
    %v2392 = vunpack.c.l.b16 %v2360
    %v2393 = vunpack.c.l.b16 %v2361
    %v2394 = vunpack.c.l.b16 %v2362
    %v2395 = vunpack.c.l.b16 %v2363
    %v2396 = vunpack.c.l.b16 %v2364
    %v2397 = vunpack.c.l.b16 %v2365
    %v2398 = vunpack.c.l.b16 %v2366
    %v2399 = vunpack.c.l.b16 %v2367
    %v2400 = vunpack.c.l.b16 %v2368
    %v2401 = vunpack.c.l.b16 %v2369
    %v2402 = vunpack.c.l.b16 %v2370
    %v2403 = vunpack.c.l.b16 %v2371
    %v2404 = vunpack.c.l.b16 %v2372
    %v2405 = vunpack.c.l.b16 %v2373
    %v2406 = vpack.c.b16 %v2391, %v2390
    %v2407 = vpack.c.b16 %v2393, %v2392
    %v2408 = vpack.c.b16 %v2395, %v2394
    %v2409 = vpack.c.b16 %v2397, %v2396
    %v2410 = vpack.c.b16 %v2399, %v2398
    %v2411 = vpack.c.b16 %v2401, %v2400
    %v2412 = vpack.c.b16 %v2403, %v2402
    %v2413 = vpack.c.b16 %v2405, %v2404
    %2422 = vmatprep.subr.bf16.mxu0 0
    %2423 = vmatpush1.bf16.msra.mxu0 %v2406
    %2424 = vmatprep.subr.bf16.mxu0 0
    %2425 = vmatpush1.bf16.msra.mxu0 %v2407
    %2426 = vmatprep.subr.bf16.mxu0 0
    %2427 = vmatpush1.bf16.msra.mxu0 %v2408
    %2428 = vmatprep.subr.bf16.mxu0 0
    %2429 = vmatpush1.bf16.msra.mxu0 %v2409
    %2430 = vmatprep.subr.bf16.mxu0 0
    %2431 = vmatpush1.bf16.msra.mxu0 %v2410
    %2432 = vmatprep.subr.bf16.mxu0 0
    %2433 = vmatpush1.bf16.msra.mxu0 %v2411
    %2434 = vmatprep.subr.bf16.mxu0 0
    %2435 = vmatpush1.bf16.msra.mxu0 %v2412
    %2436 = vmatprep.subr.bf16.mxu0 0
    %2437 = vmatpush1.bf16.msra.mxu0 %v2413
    %2438 = vmatprep.subr.bf16.mxu0 0
    %2439 = vmatpush1.bf16.msra.mxu0 0
    %2440 = vmatprep.subr.bf16.mxu0 0
    %2441 = vmatpush1.bf16.msra.mxu0 0
    %2442 = vmatprep.subr.bf16.mxu0 0
    %2443 = vmatpush1.bf16.msra.mxu0 0
    %2444 = vmatprep.subr.bf16.mxu0 0
    %2445 = vmatpush1.bf16.msra.mxu0 0
    %2446 = vmatprep.subr.bf16.mxu0 0
    %2447 = vmatpush1.bf16.msra.mxu0 0
    %2448 = vmatprep.subr.bf16.mxu0 0
    %2449 = vmatpush1.bf16.msra.mxu0 0
    %2450 = vmatprep.subr.bf16.mxu0 0
    %2451 = vmatpush1.bf16.msra.mxu0 0
    %2452 = vmatprep.subr.bf16.mxu0 0
    %2453 = vmatpush1.bf16.msra.mxu0 0
    %2454 = vmatprep.mubr.bf16.mxu0 0
    %2455 = vmatmul.mubr.bf16.gmra.mrb[0].mxu0 %v2357
    %v2456 = vpop.f32.mrb[0].mxu0
    %v2457 = vadd.f32 0.0, %v2456
    %v2458 = vpop.f32.mrb[0].mxu0
    %v2459 = vpop.f32.mrb[0].mxu0
    %v2460 = vpop.f32.mrb[0].mxu0
    %2461 = vdwg.mxu0
    %2462 = vst [vmem:[#allocation10] sm:$0x3] %v2457
    // Predicated region
    $region34: #{tpu_custom_call.1} parent=1 // pred_check
      _
    $region35: #{tpu_custom_call.1} parent=1 // pred_check_branch
      %2464 = sbr.rel (0) target = $region37
    $region36: #{tpu_custom_call.1} parent=1 // pred_region
      %s2466 = ssub.s32 32, 32
      %2467 = vsyncadd [#allocation4], %s2466
      %s2469 = sshll.u32 [#allocation10], 4
      %s2470 = int_to_ptr.vmem [resolvable:$true] %s2469
      %2472 = dma.vmem_to_hbm [thread:$0]  %s2470, 32, %s4, [#allocation4]
    $region37: #{tpu_custom_call.1} parent=1 // pred_fallthru
      _
    // Predicated region
    $region38: #{tpu_custom_call.1} parent=1 // pred_check
      _
    $region39: #{tpu_custom_call.1} parent=1 // pred_check_branch
      %2474 = sbr.rel (0) target = $region41
    $region40: #{tpu_custom_call.1} parent=1 // pred_region
      %2475 = dma.done [#allocation4], 32
    $region41: #{tpu_custom_call.1} parent=1 // pred_fallthru
      _
    %2476 = vsyncpa [#allocation3], 1
    %2477 = vsyncpa [#allocation6], 1
    %2478 = vsyncpa [#allocation9], 1
    %2479 = vsyncpa [#allocation4], 1

</llo_original>
